<compile_context>
chip_gen: v5e
topology: v5e:2x2
jax: 0.10.0
libtpu: 0.0.40
codegen_flags: <defaults>
</compile_context>

<pallas_src>
import jax
import jax.numpy as jnp
from jax.experimental import pallas as pl
from jax.experimental.pallas import tpu as pltpu

EPS = 1e-5   # PyG BatchNorm default eps
LANE = 128   # TPU lane width


# ----------------------------- Pallas kernel -------------------------------
def _gcn_fused_kernel(th_ref, x_ref, w_ref, shifts_ref, o_ref, hw_ref):
    """Fused 4-layer ChebConv GCN, everything resident in VMEM.

    th_ref:     [N, K*N]      bf16  hstack of Chebyshev basis T_0..T_{K-1}
    x_ref:      [N, C]        f32   input features, channel-padded to C (=128)
    w_ref:      [4, C, K*C]   bf16  per-layer folded weight hstacks [W_0|...|W_{K-1}]
    shifts_ref: [4, C]        f32   per-layer folded bias/BN shift
    o_ref:      [N, C]        f32   output (first out_channels columns valid)
    hw_ref:     [K*N, C]      bf16  scratch: vertically stacked h @ W_k blocks
    """
    n = x_ref.shape[0]
    c = x_ref.shape[1]
    k_order = th_ref.shape[1] // n
    th = th_ref[...]                               # [N, K*N] bf16

    def layer(h, idx, relu):
        # hW = h @ [W_0 | ... | W_{K-1}]   -> [N, K*C]   (bf16 x bf16, f32 acc)
        hw = jnp.dot(h.astype(jnp.bfloat16), w_ref[idx],
                     preferred_element_type=jnp.float32)
        # Stack hW_k vertically: row block k <- column block k of hW.
        # Static, lane-tile-aligned slices; scratch is fully overwritten.
        for k in range(k_order):
            hw_ref[k * n:(k + 1) * n, :] = hw[:, k * c:(k + 1) * c].astype(jnp.bfloat16)
        # sum_k T_k (h W_k) = Thstack @ stacked   -> [N, C]
        out = jnp.dot(th, hw_ref[...], preferred_element_type=jnp.float32)
        out = out + shifts_ref[idx:idx + 1, :]
        return jnp.maximum(out, 0.0) if relu else out

    h = x_ref[...]
    h = layer(h, 0, True)    # ChebConv1 + BN1 + ReLU (+ dropout = id in eval)
    h = layer(h, 1, True)    # ChebConv2 + BN2 + ReLU
    h = layer(h, 2, True)    # ChebConv3 + BN3 + ReLU
    o_ref[...] = layer(h, 3, False)   # ChebConv4 only


# ------------------------- Graph preprocessing (JAX) -------------------------
def scaled_laplacian(edge_index, num_nodes, lambda_max=2.0):
    """Dense T_hat = 2*L_sym/lambda_max - I, matching PyG ChebConv.__norm__."""
    row, col = edge_index[0], edge_index[1]
    w = jnp.ones(row.shape[0], jnp.float32)
    A = jnp.zeros((num_nodes, num_nodes), jnp.float32).at[row, col].add(w)
    A = A * (1.0 - jnp.eye(num_nodes, dtype=jnp.float32))   # drop self loops
    deg = A.sum(axis=1)
    dinv = jnp.where(deg > 0, 1.0 / jnp.sqrt(deg), 0.0)
    A_norm = dinv[:, None] * A * dinv[None, :]
    L = jnp.eye(num_nodes, dtype=jnp.float32) - A_norm
    return (2.0 / lambda_max) * L - jnp.eye(num_nodes, dtype=jnp.float32)


def chebyshev_basis(t_hat, K):
    """Thstack = [T_0 | T_1 | ... | T_{K-1}], shape [N, K*N]. Graph-only; compute once."""
    n = t_hat.shape[0]
    mats = [jnp.eye(n, dtype=jnp.float32)]
    if K > 1:
        mats.append(t_hat.astype(jnp.float32))
    for _ in range(2, K):
        nxt = 2.0 * jnp.matmul(t_hat, mats[-1],
                               precision=jax.lax.Precision.HIGHEST) - mats[-2]
        mats.append(nxt)
    return jnp.concatenate(mats, axis=1)


# --------------------------- Parameter folding (JAX) --------------------------
def fold_params(params):
    """Fold BN(eval) + bias into weights/shift, pad channels to a lane-dense
    C_pad (multiple of 128), reshape each layer's weights into the
    [C_pad, K*C_pad] hstack layout, and pack all four layers together."""
    w1 = params["cond1"]["w"]
    K, c_in, hidden = w1.shape
    c_out = params["cond4"]["w"].shape[2]
    c_pad = ((max(c_in, hidden, c_out) + LANE - 1) // LANE) * LANE

    def fold(conv, bn):
        w = conv["w"].astype(jnp.float32)          # [K, cin, cout]
        b = conv["b"].astype(jnp.float32)
        _, cin, cout = w.shape
        if bn is not None:
            s = bn["gamma"] * jax.lax.rsqrt(bn["var"] + EPS)
            w = w * s[None, None, :]
            shift = (b - bn["mean"]) * s + bn["beta"]
        else:
            shift = b
        w = jnp.pad(w, ((0, 0), (0, c_pad - cin), (0, c_pad - cout)))
        shift = jnp.pad(shift, (0, c_pad - cout))
        # [K, Cpad, Cpad] -> [Cpad, K*Cpad]  (column block k = folded W_k)
        whs = jnp.transpose(w, (1, 0, 2)).reshape(c_pad, K * c_pad)
        return whs, shift

    folds = [fold(params["cond1"], params["bn1"]),
             fold(params["cond2"], params["bn2"]),
             fold(params["cond3"], params["bn3"]),
             fold(params["cond4"], None)]
    w_packed = jnp.stack([f[0] for f in folds], axis=0).astype(jnp.bfloat16)
    shifts = jnp.stack([f[1] for f in folds], axis=0).astype(jnp.float32)
    return {"w": w_packed, "shifts": shifts,
            "K": K, "c_pad": c_pad, "c_out": c_out}


# ------------------------------- Fused forward --------------------------------
def gcn_forward_fused(folded, thstack, x):
    """Eval-mode forward of gcn_model as a single fused Pallas kernel."""
    n, c_in = x.shape
    c_pad = folded["c_pad"]
    K = folded["K"]
    kn = thstack.shape[1]
    kc = K * c_pad

    x_pad = jnp.pad(x.astype(jnp.float32), ((0, 0), (0, c_pad - c_in)))
    th_bf16 = thstack.astype(jnp.bfloat16)
    w_packed = folded["w"]

    flops = 4 * (2 * n * c_pad * kc + 2 * n * kn * c_pad)
    bytes_accessed = int(th_bf16.size * 2 + x_pad.size * 4 + w_packed.size * 2
                         + folded["shifts"].size * 4 + n * c_pad * 4)

    vmem = pl.BlockSpec(memory_space=pltpu.MemorySpace.VMEM)
    out = pl.pallas_call(
        _gcn_fused_kernel,
        out_shape=jax.ShapeDtypeStruct((n, c_pad), jnp.float32),
        in_specs=[vmem] * 4,
        out_specs=vmem,
        scratch_shapes=[pltpu.VMEM((kn, c_pad), jnp.bfloat16)],
        cost_estimate=pl.CostEstimate(flops=int(flops), transcendentals=0,
                                      bytes_accessed=bytes_accessed),
    )(th_bf16, x_pad, w_packed, folded["shifts"])
    return out[:, :folded["c_out"]]


# ------------------------------ Reference (JAX) --------------------------------
def gcn_reference(params, x, t_hat):
    """Plain-JAX eval-mode reference (original per-layer Chebyshev recursion, f32)."""
    def cheb(h, conv):
        w, b = conv["w"].astype(jnp.float32), conv["b"].astype(jnp.float32)
        Kk = w.shape[0]
        tx_prev = h
        out = tx_prev @ w[0]
        if Kk > 1:
            tx_cur = t_hat @ tx_prev
            out = out + tx_cur @ w[1]
            for kk in range(2, Kk):
                tx_next = 2.0 * (t_hat @ tx_cur) - tx_prev
                out = out + tx_next @ w[kk]
                tx_prev, tx_cur = tx_cur, tx_next
        return out + b[None, :]

    def bn_relu(h, bn):
        s = bn["gamma"] * jax.lax.rsqrt(bn["var"] + EPS)
        return jnp.maximum((h - bn["mean"]) * s + bn["beta"], 0.0)

    h = x.astype(jnp.float32)
    h = bn_relu(cheb(h, params["cond1"]), params["bn1"])
    h = bn_relu(cheb(h, params["cond2"]), params["bn2"])
    h = bn_relu(cheb(h, params["cond3"]), params["bn3"])
    return cheb(h, params["cond4"])


# ------------------------------ Parameter init ---------------------------------
def init_params(key, in_channels, hidden_channels, out_channels, K):
    """Deterministic synthetic parameters (glorot-ish weights, default BN stats)."""
    def cheb(key, cin, cout):
        kw, _ = jax.random.split(key)
        scale = jnp.sqrt(6.0 / (cin + cout))
        w = jax.random.uniform(kw, (K, cin, cout), jnp.float32, -scale, scale)
        return {"w": w, "b": jnp.zeros((cout,), jnp.float32)}

    def bn(c):
        return {"gamma": jnp.ones((c,), jnp.float32),
                "beta": jnp.zeros((c,), jnp.float32),
                "mean": jnp.zeros((c,), jnp.float32),
                "var": jnp.ones((c,), jnp.float32)}

    k1, k2, k3, k4 = jax.random.split(key, 4)
    return {
        "cond1": cheb(k1, in_channels, hidden_channels), "bn1": bn(hidden_channels),
        "cond2": cheb(k2, hidden_channels, hidden_channels), "bn2": bn(hidden_channels),
        "cond3": cheb(k3, hidden_channels, hidden_channels), "bn3": bn(hidden_channels),
        "cond4": cheb(k4, hidden_channels, out_channels),
    }


if __name__ == "__main__":
    N_NODES = 16
    IN_CHANNELS = 4
    HIDDEN = 32
    OUT_CHANNELS = 4
    K = 8

    key = jax.random.PRNGKey(0)
    k_x, k_p = jax.random.split(key)

    # Node features [N, C_in] and a bidirectional ring graph edge_index [2, 2N].
    x = jax.random.normal(k_x, (N_NODES, IN_CHANNELS), jnp.float32)
    src = jnp.arange(N_NODES, dtype=jnp.int32)
    dst = (src + 1) % N_NODES
    edge_index = jnp.stack([jnp.concatenate([src, dst]),
                            jnp.concatenate([dst, src])], axis=0)

    params = init_params(k_p, IN_CHANNELS, HIDDEN, OUT_CHANNELS, K)

    # Hoisted, per-graph / per-parameter-set preprocessing (done once).
    t_hat = scaled_laplacian(edge_index, N_NODES)
    thstack = chebyshev_basis(t_hat, K)          # [N, K*N]
    folded = fold_params(params)                 # BN/bias folded, lane-padded, packed

    out = gcn_forward_fused(folded, thstack, x)  # single fused Pallas kernel
    out = jax.block_until_ready(out)

    assert out.shape == (N_NODES, OUT_CHANNELS), out.shape
    assert out.dtype == jnp.float32
    assert bool(jnp.all(jnp.isfinite(out)))

    ref = gcn_reference(params, x, t_hat)
    # bf16 operands (f32 accumulation) through 4 layers -> a few % max error.
    assert bool(jnp.allclose(out, ref, rtol=5e-2, atol=5e-2)), \
        float(jnp.max(jnp.abs(out - ref)))

    print("KERNEL_OK")
</pallas_src>

<mosaic_0001>
module attributes {stable_mosaic.version = 11 : i64} {
  func.func @_gcn_fused_kernel(%arg0: memref<16x128xbf16, #tpu.memory_space<vmem>>, %arg1: memref<16x128xf32, #tpu.memory_space<vmem>>, %arg2: memref<4x128x1024xbf16, #tpu.memory_space<vmem>>, %arg3: memref<4x128xf32, #tpu.memory_space<vmem>>, %arg4: memref<16x128xf32, #tpu.memory_space<vmem>>, %arg5: memref<128x128xbf16, #tpu.memory_space<vmem>>) attributes {dimension_semantics = [], scalar_prefetch = 0 : i64, scratch_operands = 1 : i64, tpu.core_type = #tpu.core_type<tc>} {
    %c0 = arith.constant 0 : index
    %c0_0 = arith.constant 0 : index
    %0 = vector.load %arg0[%c0, %c0_0] : memref<16x128xbf16, #tpu.memory_space<vmem>>, vector<16x128xbf16>
    %c0_1 = arith.constant 0 : index
    %c0_2 = arith.constant 0 : index
    %1 = vector.load %arg1[%c0_1, %c0_2] : memref<16x128xf32, #tpu.memory_space<vmem>>, vector<16x128xf32>
    %2 = arith.truncf %1 : vector<16x128xf32> to vector<16x128xbf16>
    %c0_3 = arith.constant 0 : index
    %c0_4 = arith.constant 0 : index
    %c0_5 = arith.constant 0 : index
    %3 = vector.load %arg2[%c0_3, %c0_4, %c0_5] : memref<4x128x1024xbf16, #tpu.memory_space<vmem>>, vector<1x128x1024xbf16>
    %4 = vector.shape_cast %3 : vector<1x128x1024xbf16> to vector<128x1024xbf16>
    %cst = arith.constant dense<0.000000e+00> : vector<16x1024xf32>
    %5 = tpu.matmul %2, %4, %cst {dimension_numbers = #tpu.dot_dimension_numbers<[1], [0], [0], [1], [0, 0, 1, 1], [], []>} : vector<16x128xbf16>, vector<128x1024xbf16>, vector<16x1024xf32> -> vector<16x1024xf32>
    %6 = vector.extract_strided_slice %5 {offsets = [0, 0], sizes = [16, 128], strides = [1, 1]} : vector<16x1024xf32> to vector<16x128xf32>
    %7 = arith.truncf %6 : vector<16x128xf32> to vector<16x128xbf16>
    %c0_6 = arith.constant 0 : index
    %c0_7 = arith.constant 0 : index
    %8 = vector.load %arg5[%c0_6, %c0_7] : memref<128x128xbf16, #tpu.memory_space<vmem>>, vector<16x128xbf16>
    tpu.vector_store %arg5[%c0_6, %c0_7], %7 {strides = array<i32>} : memref<128x128xbf16, #tpu.memory_space<vmem>>, vector<16x128xbf16>,
    %9 = vector.extract_strided_slice %5 {offsets = [0, 128], sizes = [16, 128], strides = [1, 1]} : vector<16x1024xf32> to vector<16x128xf32>
    %10 = arith.truncf %9 : vector<16x128xf32> to vector<16x128xbf16>
    %c16 = arith.constant 16 : index
    %c0_8 = arith.constant 0 : index
    %11 = vector.load %arg5[%c16, %c0_8] : memref<128x128xbf16, #tpu.memory_space<vmem>>, vector<16x128xbf16>
    tpu.vector_store %arg5[%c16, %c0_8], %10 {strides = array<i32>} : memref<128x128xbf16, #tpu.memory_space<vmem>>, vector<16x128xbf16>,
    %12 = vector.extract_strided_slice %5 {offsets = [0, 256], sizes = [16, 128], strides = [1, 1]} : vector<16x1024xf32> to vector<16x128xf32>
    %13 = arith.truncf %12 : vector<16x128xf32> to vector<16x128xbf16>
    %c32 = arith.constant 32 : index
    %c0_9 = arith.constant 0 : index
    %14 = vector.load %arg5[%c32, %c0_9] : memref<128x128xbf16, #tpu.memory_space<vmem>>, vector<16x128xbf16>
    tpu.vector_store %arg5[%c32, %c0_9], %13 {strides = array<i32>} : memref<128x128xbf16, #tpu.memory_space<vmem>>, vector<16x128xbf16>,
    %15 = vector.extract_strided_slice %5 {offsets = [0, 384], sizes = [16, 128], strides = [1, 1]} : vector<16x1024xf32> to vector<16x128xf32>
    %16 = arith.truncf %15 : vector<16x128xf32> to vector<16x128xbf16>
    %c48 = arith.constant 48 : index
    %c0_10 = arith.constant 0 : index
    %17 = vector.load %arg5[%c48, %c0_10] : memref<128x128xbf16, #tpu.memory_space<vmem>>, vector<16x128xbf16>
    tpu.vector_store %arg5[%c48, %c0_10], %16 {strides = array<i32>} : memref<128x128xbf16, #tpu.memory_space<vmem>>, vector<16x128xbf16>,
    %18 = vector.extract_strided_slice %5 {offsets = [0, 512], sizes = [16, 128], strides = [1, 1]} : vector<16x1024xf32> to vector<16x128xf32>
    %19 = arith.truncf %18 : vector<16x128xf32> to vector<16x128xbf16>
    %c64 = arith.constant 64 : index
    %c0_11 = arith.constant 0 : index
    %20 = vector.load %arg5[%c64, %c0_11] : memref<128x128xbf16, #tpu.memory_space<vmem>>, vector<16x128xbf16>
    tpu.vector_store %arg5[%c64, %c0_11], %19 {strides = array<i32>} : memref<128x128xbf16, #tpu.memory_space<vmem>>, vector<16x128xbf16>,
    %21 = vector.extract_strided_slice %5 {offsets = [0, 640], sizes = [16, 128], strides = [1, 1]} : vector<16x1024xf32> to vector<16x128xf32>
    %22 = arith.truncf %21 : vector<16x128xf32> to vector<16x128xbf16>
    %c80 = arith.constant 80 : index
    %c0_12 = arith.constant 0 : index
    %23 = vector.load %arg5[%c80, %c0_12] : memref<128x128xbf16, #tpu.memory_space<vmem>>, vector<16x128xbf16>
    tpu.vector_store %arg5[%c80, %c0_12], %22 {strides = array<i32>} : memref<128x128xbf16, #tpu.memory_space<vmem>>, vector<16x128xbf16>,
    %24 = vector.extract_strided_slice %5 {offsets = [0, 768], sizes = [16, 128], strides = [1, 1]} : vector<16x1024xf32> to vector<16x128xf32>
    %25 = arith.truncf %24 : vector<16x128xf32> to vector<16x128xbf16>
    %c96 = arith.constant 96 : index
    %c0_13 = arith.constant 0 : index
    %26 = vector.load %arg5[%c96, %c0_13] : memref<128x128xbf16, #tpu.memory_space<vmem>>, vector<16x128xbf16>
    tpu.vector_store %arg5[%c96, %c0_13], %25 {strides = array<i32>} : memref<128x128xbf16, #tpu.memory_space<vmem>>, vector<16x128xbf16>,
    %27 = vector.extract_strided_slice %5 {offsets = [0, 896], sizes = [16, 128], strides = [1, 1]} : vector<16x1024xf32> to vector<16x128xf32>
    %28 = arith.truncf %27 : vector<16x128xf32> to vector<16x128xbf16>
    %c112 = arith.constant 112 : index
    %c0_14 = arith.constant 0 : index
    %29 = vector.load %arg5[%c112, %c0_14] : memref<128x128xbf16, #tpu.memory_space<vmem>>, vector<16x128xbf16>
    tpu.vector_store %arg5[%c112, %c0_14], %28 {strides = array<i32>} : memref<128x128xbf16, #tpu.memory_space<vmem>>, vector<16x128xbf16>,
    %c0_15 = arith.constant 0 : index
    %c0_16 = arith.constant 0 : index
    %30 = vector.load %arg5[%c0_15, %c0_16] : memref<128x128xbf16, #tpu.memory_space<vmem>>, vector<128x128xbf16>
    %cst_17 = arith.constant dense<0.000000e+00> : vector<16x128xf32>
    %31 = tpu.matmul %0, %30, %cst_17 {dimension_numbers = #tpu.dot_dimension_numbers<[1], [0], [0], [1], [0, 0, 1, 1], [], []>} : vector<16x128xbf16>, vector<128x128xbf16>, vector<16x128xf32> -> vector<16x128xf32>
    %c0_18 = arith.constant 0 : index
    %c0_19 = arith.constant 0 : index
    %32 = vector.load %arg3[%c0_18, %c0_19] : memref<4x128xf32, #tpu.memory_space<vmem>>, vector<1x128xf32>
    %33 = vector.broadcast %32 : vector<1x128xf32> to vector<16x128xf32>
    %34 = arith.addf %31, %33 : vector<16x128xf32>
    %cst_20 = arith.constant 0.000000e+00 : f32
    %35 = vector.broadcast %cst_20 : f32 to vector<16x128xf32>
    %36 = arith.maximumf %34, %35 : vector<16x128xf32>
    %37 = arith.truncf %36 : vector<16x128xf32> to vector<16x128xbf16>
    %c1 = arith.constant 1 : index
    %c0_21 = arith.constant 0 : index
    %c0_22 = arith.constant 0 : index
    %38 = vector.load %arg2[%c1, %c0_21, %c0_22] : memref<4x128x1024xbf16, #tpu.memory_space<vmem>>, vector<1x128x1024xbf16>
    %39 = vector.shape_cast %38 : vector<1x128x1024xbf16> to vector<128x1024xbf16>
    %cst_23 = arith.constant dense<0.000000e+00> : vector<16x1024xf32>
    %40 = tpu.matmul %37, %39, %cst_23 {dimension_numbers = #tpu.dot_dimension_numbers<[1], [0], [0], [1], [0, 0, 1, 1], [], []>} : vector<16x128xbf16>, vector<128x1024xbf16>, vector<16x1024xf32> -> vector<16x1024xf32>
    %41 = vector.extract_strided_slice %40 {offsets = [0, 0], sizes = [16, 128], strides = [1, 1]} : vector<16x1024xf32> to vector<16x128xf32>
    %42 = arith.truncf %41 : vector<16x128xf32> to vector<16x128xbf16>
    %c0_24 = arith.constant 0 : index
    %c0_25 = arith.constant 0 : index
    %43 = vector.load %arg5[%c0_24, %c0_25] : memref<128x128xbf16, #tpu.memory_space<vmem>>, vector<16x128xbf16>
    tpu.vector_store %arg5[%c0_24, %c0_25], %42 {strides = array<i32>} : memref<128x128xbf16, #tpu.memory_space<vmem>>, vector<16x128xbf16>,
    %44 = vector.extract_strided_slice %40 {offsets = [0, 128], sizes = [16, 128], strides = [1, 1]} : vector<16x1024xf32> to vector<16x128xf32>
    %45 = arith.truncf %44 : vector<16x128xf32> to vector<16x128xbf16>
    %c16_26 = arith.constant 16 : index
    %c0_27 = arith.constant 0 : index
    %46 = vector.load %arg5[%c16_26, %c0_27] : memref<128x128xbf16, #tpu.memory_space<vmem>>, vector<16x128xbf16>
    tpu.vector_store %arg5[%c16_26, %c0_27], %45 {strides = array<i32>} : memref<128x128xbf16, #tpu.memory_space<vmem>>, vector<16x128xbf16>,
    %47 = vector.extract_strided_slice %40 {offsets = [0, 256], sizes = [16, 128], strides = [1, 1]} : vector<16x1024xf32> to vector<16x128xf32>
    %48 = arith.truncf %47 : vector<16x128xf32> to vector<16x128xbf16>
    %c32_28 = arith.constant 32 : index
    %c0_29 = arith.constant 0 : index
    %49 = vector.load %arg5[%c32_28, %c0_29] : memref<128x128xbf16, #tpu.memory_space<vmem>>, vector<16x128xbf16>
    tpu.vector_store %arg5[%c32_28, %c0_29], %48 {strides = array<i32>} : memref<128x128xbf16, #tpu.memory_space<vmem>>, vector<16x128xbf16>,
    %50 = vector.extract_strided_slice %40 {offsets = [0, 384], sizes = [16, 128], strides = [1, 1]} : vector<16x1024xf32> to vector<16x128xf32>
    %51 = arith.truncf %50 : vector<16x128xf32> to vector<16x128xbf16>
    %c48_30 = arith.constant 48 : index
    %c0_31 = arith.constant 0 : index
    %52 = vector.load %arg5[%c48_30, %c0_31] : memref<128x128xbf16, #tpu.memory_space<vmem>>, vector<16x128xbf16>
    tpu.vector_store %arg5[%c48_30, %c0_31], %51 {strides = array<i32>} : memref<128x128xbf16, #tpu.memory_space<vmem>>, vector<16x128xbf16>,
    %53 = vector.extract_strided_slice %40 {offsets = [0, 512], sizes = [16, 128], strides = [1, 1]} : vector<16x1024xf32> to vector<16x128xf32>
    %54 = arith.truncf %53 : vector<16x128xf32> to vector<16x128xbf16>
    %c64_32 = arith.constant 64 : index
    %c0_33 = arith.constant 0 : index
    %55 = vector.load %arg5[%c64_32, %c0_33] : memref<128x128xbf16, #tpu.memory_space<vmem>>, vector<16x128xbf16>
    tpu.vector_store %arg5[%c64_32, %c0_33], %54 {strides = array<i32>} : memref<128x128xbf16, #tpu.memory_space<vmem>>, vector<16x128xbf16>,
    %56 = vector.extract_strided_slice %40 {offsets = [0, 640], sizes = [16, 128], strides = [1, 1]} : vector<16x1024xf32> to vector<16x128xf32>
    %57 = arith.truncf %56 : vector<16x128xf32> to vector<16x128xbf16>
    %c80_34 = arith.constant 80 : index
    %c0_35 = arith.constant 0 : index
    %58 = vector.load %arg5[%c80_34, %c0_35] : memref<128x128xbf16, #tpu.memory_space<vmem>>, vector<16x128xbf16>
    tpu.vector_store %arg5[%c80_34, %c0_35], %57 {strides = array<i32>} : memref<128x128xbf16, #tpu.memory_space<vmem>>, vector<16x128xbf16>,
    %59 = vector.extract_strided_slice %40 {offsets = [0, 768], sizes = [16, 128], strides = [1, 1]} : vector<16x1024xf32> to vector<16x128xf32>
    %60 = arith.truncf %59 : vector<16x128xf32> to vector<16x128xbf16>
    %c96_36 = arith.constant 96 : index
    %c0_37 = arith.constant 0 : index
    %61 = vector.load %arg5[%c96_36, %c0_37] : memref<128x128xbf16, #tpu.memory_space<vmem>>, vector<16x128xbf16>
    tpu.vector_store %arg5[%c96_36, %c0_37], %60 {strides = array<i32>} : memref<128x128xbf16, #tpu.memory_space<vmem>>, vector<16x128xbf16>,
    %62 = vector.extract_strided_slice %40 {offsets = [0, 896], sizes = [16, 128], strides = [1, 1]} : vector<16x1024xf32> to vector<16x128xf32>
    %63 = arith.truncf %62 : vector<16x128xf32> to vector<16x128xbf16>
    %c112_38 = arith.constant 112 : index
    %c0_39 = arith.constant 0 : index
    %64 = vector.load %arg5[%c112_38, %c0_39] : memref<128x128xbf16, #tpu.memory_space<vmem>>, vector<16x128xbf16>
    tpu.vector_store %arg5[%c112_38, %c0_39], %63 {strides = array<i32>} : memref<128x128xbf16, #tpu.memory_space<vmem>>, vector<16x128xbf16>,
    %c0_40 = arith.constant 0 : index
    %c0_41 = arith.constant 0 : index
    %65 = vector.load %arg5[%c0_40, %c0_41] : memref<128x128xbf16, #tpu.memory_space<vmem>>, vector<128x128xbf16>
    %cst_42 = arith.constant dense<0.000000e+00> : vector<16x128xf32>
    %66 = tpu.matmul %0, %65, %cst_42 {dimension_numbers = #tpu.dot_dimension_numbers<[1], [0], [0], [1], [0, 0, 1, 1], [], []>} : vector<16x128xbf16>, vector<128x128xbf16>, vector<16x128xf32> -> vector<16x128xf32>
    %c1_43 = arith.constant 1 : index
    %c0_44 = arith.constant 0 : index
    %67 = vector.load %arg3[%c1_43, %c0_44] : memref<4x128xf32, #tpu.memory_space<vmem>>, vector<1x128xf32>
    %68 = vector.broadcast %67 : vector<1x128xf32> to vector<16x128xf32>
    %69 = arith.addf %66, %68 : vector<16x128xf32>
    %cst_45 = arith.constant 0.000000e+00 : f32
    %70 = vector.broadcast %cst_45 : f32 to vector<16x128xf32>
    %71 = arith.maximumf %69, %70 : vector<16x128xf32>
    %72 = arith.truncf %71 : vector<16x128xf32> to vector<16x128xbf16>
    %c2 = arith.constant 2 : index
    %c0_46 = arith.constant 0 : index
    %c0_47 = arith.constant 0 : index
    %73 = vector.load %arg2[%c2, %c0_46, %c0_47] : memref<4x128x1024xbf16, #tpu.memory_space<vmem>>, vector<1x128x1024xbf16>
    %74 = vector.shape_cast %73 : vector<1x128x1024xbf16> to vector<128x1024xbf16>
    %cst_48 = arith.constant dense<0.000000e+00> : vector<16x1024xf32>
    %75 = tpu.matmul %72, %74, %cst_48 {dimension_numbers = #tpu.dot_dimension_numbers<[1], [0], [0], [1], [0, 0, 1, 1], [], []>} : vector<16x128xbf16>, vector<128x1024xbf16>, vector<16x1024xf32> -> vector<16x1024xf32>
    %76 = vector.extract_strided_slice %75 {offsets = [0, 0], sizes = [16, 128], strides = [1, 1]} : vector<16x1024xf32> to vector<16x128xf32>
    %77 = arith.truncf %76 : vector<16x128xf32> to vector<16x128xbf16>
    %c0_49 = arith.constant 0 : index
    %c0_50 = arith.constant 0 : index
    %78 = vector.load %arg5[%c0_49, %c0_50] : memref<128x128xbf16, #tpu.memory_space<vmem>>, vector<16x128xbf16>
    tpu.vector_store %arg5[%c0_49, %c0_50], %77 {strides = array<i32>} : memref<128x128xbf16, #tpu.memory_space<vmem>>, vector<16x128xbf16>,
    %79 = vector.extract_strided_slice %75 {offsets = [0, 128], sizes = [16, 128], strides = [1, 1]} : vector<16x1024xf32> to vector<16x128xf32>
    %80 = arith.truncf %79 : vector<16x128xf32> to vector<16x128xbf16>
    %c16_51 = arith.constant 16 : index
    %c0_52 = arith.constant 0 : index
    %81 = vector.load %arg5[%c16_51, %c0_52] : memref<128x128xbf16, #tpu.memory_space<vmem>>, vector<16x128xbf16>
    tpu.vector_store %arg5[%c16_51, %c0_52], %80 {strides = array<i32>} : memref<128x128xbf16, #tpu.memory_space<vmem>>, vector<16x128xbf16>,
    %82 = vector.extract_strided_slice %75 {offsets = [0, 256], sizes = [16, 128], strides = [1, 1]} : vector<16x1024xf32> to vector<16x128xf32>
    %83 = arith.truncf %82 : vector<16x128xf32> to vector<16x128xbf16>
    %c32_53 = arith.constant 32 : index
    %c0_54 = arith.constant 0 : index
    %84 = vector.load %arg5[%c32_53, %c0_54] : memref<128x128xbf16, #tpu.memory_space<vmem>>, vector<16x128xbf16>
    tpu.vector_store %arg5[%c32_53, %c0_54], %83 {strides = array<i32>} : memref<128x128xbf16, #tpu.memory_space<vmem>>, vector<16x128xbf16>,
    %85 = vector.extract_strided_slice %75 {offsets = [0, 384], sizes = [16, 128], strides = [1, 1]} : vector<16x1024xf32> to vector<16x128xf32>
    %86 = arith.truncf %85 : vector<16x128xf32> to vector<16x128xbf16>
    %c48_55 = arith.constant 48 : index
    %c0_56 = arith.constant 0 : index
    %87 = vector.load %arg5[%c48_55, %c0_56] : memref<128x128xbf16, #tpu.memory_space<vmem>>, vector<16x128xbf16>
    tpu.vector_store %arg5[%c48_55, %c0_56], %86 {strides = array<i32>} : memref<128x128xbf16, #tpu.memory_space<vmem>>, vector<16x128xbf16>,
    %88 = vector.extract_strided_slice %75 {offsets = [0, 512], sizes = [16, 128], strides = [1, 1]} : vector<16x1024xf32> to vector<16x128xf32>
    %89 = arith.truncf %88 : vector<16x128xf32> to vector<16x128xbf16>
    %c64_57 = arith.constant 64 : index
    %c0_58 = arith.constant 0 : index
    %90 = vector.load %arg5[%c64_57, %c0_58] : memref<128x128xbf16, #tpu.memory_space<vmem>>, vector<16x128xbf16>
    tpu.vector_store %arg5[%c64_57, %c0_58], %89 {strides = array<i32>} : memref<128x128xbf16, #tpu.memory_space<vmem>>, vector<16x128xbf16>,
    %91 = vector.extract_strided_slice %75 {offsets = [0, 640], sizes = [16, 128], strides = [1, 1]} : vector<16x1024xf32> to vector<16x128xf32>
    %92 = arith.truncf %91 : vector<16x128xf32> to vector<16x128xbf16>
    %c80_59 = arith.constant 80 : index
    %c0_60 = arith.constant 0 : index
    %93 = vector.load %arg5[%c80_59, %c0_60] : memref<128x128xbf16, #tpu.memory_space<vmem>>, vector<16x128xbf16>
    tpu.vector_store %arg5[%c80_59, %c0_60], %92 {strides = array<i32>} : memref<128x128xbf16, #tpu.memory_space<vmem>>, vector<16x128xbf16>,
    %94 = vector.extract_strided_slice %75 {offsets = [0, 768], sizes = [16, 128], strides = [1, 1]} : vector<16x1024xf32> to vector<16x128xf32>
    %95 = arith.truncf %94 : vector<16x128xf32> to vector<16x128xbf16>
    %c96_61 = arith.constant 96 : index
    %c0_62 = arith.constant 0 : index
    %96 = vector.load %arg5[%c96_61, %c0_62] : memref<128x128xbf16, #tpu.memory_space<vmem>>, vector<16x128xbf16>
    tpu.vector_store %arg5[%c96_61, %c0_62], %95 {strides = array<i32>} : memref<128x128xbf16, #tpu.memory_space<vmem>>, vector<16x128xbf16>,
    %97 = vector.extract_strided_slice %75 {offsets = [0, 896], sizes = [16, 128], strides = [1, 1]} : vector<16x1024xf32> to vector<16x128xf32>
    %98 = arith.truncf %97 : vector<16x128xf32> to vector<16x128xbf16>
    %c112_63 = arith.constant 112 : index
    %c0_64 = arith.constant 0 : index
    %99 = vector.load %arg5[%c112_63, %c0_64] : memref<128x128xbf16, #tpu.memory_space<vmem>>, vector<16x128xbf16>
    tpu.vector_store %arg5[%c112_63, %c0_64], %98 {strides = array<i32>} : memref<128x128xbf16, #tpu.memory_space<vmem>>, vector<16x128xbf16>,
    %c0_65 = arith.constant 0 : index
    %c0_66 = arith.constant 0 : index
    %100 = vector.load %arg5[%c0_65, %c0_66] : memref<128x128xbf16, #tpu.memory_space<vmem>>, vector<128x128xbf16>
    %cst_67 = arith.constant dense<0.000000e+00> : vector<16x128xf32>
    %101 = tpu.matmul %0, %100, %cst_67 {dimension_numbers = #tpu.dot_dimension_numbers<[1], [0], [0], [1], [0, 0, 1, 1], [], []>} : vector<16x128xbf16>, vector<128x128xbf16>, vector<16x128xf32> -> vector<16x128xf32>
    %c2_68 = arith.constant 2 : index
    %c0_69 = arith.constant 0 : index
    %102 = vector.load %arg3[%c2_68, %c0_69] : memref<4x128xf32, #tpu.memory_space<vmem>>, vector<1x128xf32>
    %103 = vector.broadcast %102 : vector<1x128xf32> to vector<16x128xf32>
    %104 = arith.addf %101, %103 : vector<16x128xf32>
    %cst_70 = arith.constant 0.000000e+00 : f32
    %105 = vector.broadcast %cst_70 : f32 to vector<16x128xf32>
    %106 = arith.maximumf %104, %105 : vector<16x128xf32>
    %107 = arith.truncf %106 : vector<16x128xf32> to vector<16x128xbf16>
    %c3 = arith.constant 3 : index
    %c0_71 = arith.constant 0 : index
    %c0_72 = arith.constant 0 : index
    %108 = vector.load %arg2[%c3, %c0_71, %c0_72] : memref<4x128x1024xbf16, #tpu.memory_space<vmem>>, vector<1x128x1024xbf16>
    %109 = vector.shape_cast %108 : vector<1x128x1024xbf16> to vector<128x1024xbf16>
    %cst_73 = arith.constant dense<0.000000e+00> : vector<16x1024xf32>
    %110 = tpu.matmul %107, %109, %cst_73 {dimension_numbers = #tpu.dot_dimension_numbers<[1], [0], [0], [1], [0, 0, 1, 1], [], []>} : vector<16x128xbf16>, vector<128x1024xbf16>, vector<16x1024xf32> -> vector<16x1024xf32>
    %111 = vector.extract_strided_slice %110 {offsets = [0, 0], sizes = [16, 128], strides = [1, 1]} : vector<16x1024xf32> to vector<16x128xf32>
    %112 = arith.truncf %111 : vector<16x128xf32> to vector<16x128xbf16>
    %c0_74 = arith.constant 0 : index
    %c0_75 = arith.constant 0 : index
    %113 = vector.load %arg5[%c0_74, %c0_75] : memref<128x128xbf16, #tpu.memory_space<vmem>>, vector<16x128xbf16>
    tpu.vector_store %arg5[%c0_74, %c0_75], %112 {strides = array<i32>} : memref<128x128xbf16, #tpu.memory_space<vmem>>, vector<16x128xbf16>,
    %114 = vector.extract_strided_slice %110 {offsets = [0, 128], sizes = [16, 128], strides = [1, 1]} : vector<16x1024xf32> to vector<16x128xf32>
    %115 = arith.truncf %114 : vector<16x128xf32> to vector<16x128xbf16>
    %c16_76 = arith.constant 16 : index
    %c0_77 = arith.constant 0 : index
    %116 = vector.load %arg5[%c16_76, %c0_77] : memref<128x128xbf16, #tpu.memory_space<vmem>>, vector<16x128xbf16>
    tpu.vector_store %arg5[%c16_76, %c0_77], %115 {strides = array<i32>} : memref<128x128xbf16, #tpu.memory_space<vmem>>, vector<16x128xbf16>,
    %117 = vector.extract_strided_slice %110 {offsets = [0, 256], sizes = [16, 128], strides = [1, 1]} : vector<16x1024xf32> to vector<16x128xf32>
    %118 = arith.truncf %117 : vector<16x128xf32> to vector<16x128xbf16>
    %c32_78 = arith.constant 32 : index
    %c0_79 = arith.constant 0 : index
    %119 = vector.load %arg5[%c32_78, %c0_79] : memref<128x128xbf16, #tpu.memory_space<vmem>>, vector<16x128xbf16>
    tpu.vector_store %arg5[%c32_78, %c0_79], %118 {strides = array<i32>} : memref<128x128xbf16, #tpu.memory_space<vmem>>, vector<16x128xbf16>,
    %120 = vector.extract_strided_slice %110 {offsets = [0, 384], sizes = [16, 128], strides = [1, 1]} : vector<16x1024xf32> to vector<16x128xf32>
    %121 = arith.truncf %120 : vector<16x128xf32> to vector<16x128xbf16>
    %c48_80 = arith.constant 48 : index
    %c0_81 = arith.constant 0 : index
    %122 = vector.load %arg5[%c48_80, %c0_81] : memref<128x128xbf16, #tpu.memory_space<vmem>>, vector<16x128xbf16>
    tpu.vector_store %arg5[%c48_80, %c0_81], %121 {strides = array<i32>} : memref<128x128xbf16, #tpu.memory_space<vmem>>, vector<16x128xbf16>,
    %123 = vector.extract_strided_slice %110 {offsets = [0, 512], sizes = [16, 128], strides = [1, 1]} : vector<16x1024xf32> to vector<16x128xf32>
    %124 = arith.truncf %123 : vector<16x128xf32> to vector<16x128xbf16>
    %c64_82 = arith.constant 64 : index
    %c0_83 = arith.constant 0 : index
    %125 = vector.load %arg5[%c64_82, %c0_83] : memref<128x128xbf16, #tpu.memory_space<vmem>>, vector<16x128xbf16>
    tpu.vector_store %arg5[%c64_82, %c0_83], %124 {strides = array<i32>} : memref<128x128xbf16, #tpu.memory_space<vmem>>, vector<16x128xbf16>,
    %126 = vector.extract_strided_slice %110 {offsets = [0, 640], sizes = [16, 128], strides = [1, 1]} : vector<16x1024xf32> to vector<16x128xf32>
    %127 = arith.truncf %126 : vector<16x128xf32> to vector<16x128xbf16>
    %c80_84 = arith.constant 80 : index
    %c0_85 = arith.constant 0 : index
    %128 = vector.load %arg5[%c80_84, %c0_85] : memref<128x128xbf16, #tpu.memory_space<vmem>>, vector<16x128xbf16>
    tpu.vector_store %arg5[%c80_84, %c0_85], %127 {strides = array<i32>} : memref<128x128xbf16, #tpu.memory_space<vmem>>, vector<16x128xbf16>,
    %129 = vector.extract_strided_slice %110 {offsets = [0, 768], sizes = [16, 128], strides = [1, 1]} : vector<16x1024xf32> to vector<16x128xf32>
    %130 = arith.truncf %129 : vector<16x128xf32> to vector<16x128xbf16>
    %c96_86 = arith.constant 96 : index
    %c0_87 = arith.constant 0 : index
    %131 = vector.load %arg5[%c96_86, %c0_87] : memref<128x128xbf16, #tpu.memory_space<vmem>>, vector<16x128xbf16>
    tpu.vector_store %arg5[%c96_86, %c0_87], %130 {strides = array<i32>} : memref<128x128xbf16, #tpu.memory_space<vmem>>, vector<16x128xbf16>,
    %132 = vector.extract_strided_slice %110 {offsets = [0, 896], sizes = [16, 128], strides = [1, 1]} : vector<16x1024xf32> to vector<16x128xf32>
    %133 = arith.truncf %132 : vector<16x128xf32> to vector<16x128xbf16>
    %c112_88 = arith.constant 112 : index
    %c0_89 = arith.constant 0 : index
    %134 = vector.load %arg5[%c112_88, %c0_89] : memref<128x128xbf16, #tpu.memory_space<vmem>>, vector<16x128xbf16>
    tpu.vector_store %arg5[%c112_88, %c0_89], %133 {strides = array<i32>} : memref<128x128xbf16, #tpu.memory_space<vmem>>, vector<16x128xbf16>,
    %c0_90 = arith.constant 0 : index
    %c0_91 = arith.constant 0 : index
    %135 = vector.load %arg5[%c0_90, %c0_91] : memref<128x128xbf16, #tpu.memory_space<vmem>>, vector<128x128xbf16>
    %cst_92 = arith.constant dense<0.000000e+00> : vector<16x128xf32>
    %136 = tpu.matmul %0, %135, %cst_92 {dimension_numbers = #tpu.dot_dimension_numbers<[1], [0], [0], [1], [0, 0, 1, 1], [], []>} : vector<16x128xbf16>, vector<128x128xbf16>, vector<16x128xf32> -> vector<16x128xf32>
    %c3_93 = arith.constant 3 : index
    %c0_94 = arith.constant 0 : index
    %137 = vector.load %arg3[%c3_93, %c0_94] : memref<4x128xf32, #tpu.memory_space<vmem>>, vector<1x128xf32>
    %138 = vector.broadcast %137 : vector<1x128xf32> to vector<16x128xf32>
    %139 = arith.addf %136, %138 : vector<16x128xf32>
    %c0_95 = arith.constant 0 : index
    %c0_96 = arith.constant 0 : index
    %140 = vector.load %arg4[%c0_95, %c0_96] : memref<16x128xf32, #tpu.memory_space<vmem>>, vector<16x128xf32>
    tpu.vector_store %arg4[%c0_95, %c0_96], %139 {strides = array<i32>} : memref<16x128xf32, #tpu.memory_space<vmem>>, vector<16x128xf32>,
    return
  }
}

</mosaic_0001>

<llo_original>
// kernel: tpu_custom_call.1
$region0: #{tpu_custom_call.1}
  #allocation0 [shape = 'u32[]', space=smem, size = 0x4, offset = 0x4, fixed_abs, tag = 'smem constant byte address 0x4 - core index']
  #allocation1 [shape = 'u32[72,128]{1,0:T(1,128)}', space=vmem, size = 0x9000, scoped, tag = 'internal scratch']
  #allocation2 [shape = 'bf16[128,128]{1,0:T(8,128)(2,1)}', space=vmem, size = 0x8000, scoped, tag = 'scratch operand']
  %s0 = inlined_call_operand.hbm [shape: bf16[16,128], index: 0, kind: input, shape index: {}]
  %s1 = inlined_call_operand.hbm [shape: f32[16,128], index: 1, kind: input, shape index: {}]
  %s2 = inlined_call_operand.hbm [shape: bf16[4,128,1024], index: 2, kind: input, shape index: {}]
  %s3 = inlined_call_operand.hbm [shape: f32[4,128], index: 3, kind: input, shape index: {}]
  %s4 = inlined_call_operand.hbm [shape: f32[16,128], index: 4, kind: output, shape index: {}]
  %s5 = sld [smem:[#allocation0]]
  $region42: #{tpu_custom_call.1} parent=0
    _
  %s7 = ssub.s32 1, %s5
  %s8 = scalar_select 0, %s7, %s5
  $region1: #{tpu_custom_call.1} parent=0
    #allocation3 [shape = 'u8[4096]{0}', space=vmem, size = 0x1000, scoped, tag = 'input window, operand 0, single buffered']
    #allocation4 [shape = 's32[1]{0}', space=sflag, size = 0x4, scoped, tag = 'scoped memory for tpu_custom_call.1']
    #allocation5 [shape = 's32[1]{0}', space=sflag, size = 0x4, scoped, tag = 'scoped memory for tpu_custom_call.1']
    #allocation6 [shape = 'u8[8192]{0}', space=vmem, size = 0x2000, scoped, tag = 'input window, operand 1, single buffered']
    #allocation7 [shape = 's32[1]{0}', space=sflag, size = 0x4, scoped, tag = 'scoped memory for tpu_custom_call.1']
    #allocation8 [shape = 'u8[1048576]{0}', space=vmem, size = 0x100000, scoped, tag = 'input window, operand 2, single buffered']
    #allocation9 [shape = 'u8[2048]{0}', space=vmem, size = 0x800, scoped, tag = 'input window, operand 3, single buffered']
    #allocation10 [shape = 's32[1]{0}', space=sflag, size = 0x4, scoped, tag = 'scoped memory for tpu_custom_call.1']
    #allocation11 [shape = 'u8[8192]{0}', space=vmem, size = 0x2000, scoped, tag = 'output window, operand 0, single buffered']
    %9 = vsyncpa [#allocation4], 0
    %10 = vsyncpa [#allocation7], 0
    %11 = vsyncpa [#allocation10], 0
    %12 = vsyncpa [#allocation5], 0
    // Predicated region
    $region2: #{tpu_custom_call.1} parent=1 // pred_check
      _
    $region3: #{tpu_custom_call.1} parent=1 // pred_check_branch
      %14 = sbr.rel (0) target = $region5
    $region4: #{tpu_custom_call.1} parent=1 // pred_region
      %16 = vsyncadd [#allocation4], 0
      %s17 = sshll.u32 %s0, 4
      %s18 = int_to_ptr.hbm [resolvable:$true] %s17
      %s19 = sshll.u32 [#allocation3], 4
      %s20 = int_to_ptr.vmem [resolvable:$true] %s19
      %25 = dma.hbm_to_vmem [thread:$0]  %s18, 128, %s20, [#allocation4], 64, 64, 4
    $region5: #{tpu_custom_call.1} parent=1 // pred_fallthru
      _
    // Predicated region
    $region6: #{tpu_custom_call.1} parent=1 // pred_check
      _
    $region7: #{tpu_custom_call.1} parent=1 // pred_check_branch
      %27 = sbr.rel (0) target = $region9
    $region8: #{tpu_custom_call.1} parent=1 // pred_region
      %29 = vsyncadd [#allocation7], 0
      %s30 = sshll.u32 %s1, 4
      %s31 = int_to_ptr.hbm [resolvable:$true] %s30
      %s32 = sshll.u32 [#allocation6], 4
      %s33 = int_to_ptr.vmem [resolvable:$true] %s32
      %38 = dma.hbm_to_vmem [thread:$0]  %s31, 256, %s33, [#allocation7], 128, 128, 8
    $region9: #{tpu_custom_call.1} parent=1 // pred_fallthru
      _
    // Predicated region
    $region10: #{tpu_custom_call.1} parent=1 // pred_check
      _
    $region11: #{tpu_custom_call.1} parent=1 // pred_check_branch
      %40 = sbr.rel (0) target = $region13
    $region12: #{tpu_custom_call.1} parent=1 // pred_region
      %42 = vsyncadd [#allocation7], 0
      %s43 = sshll.u32 %s2, 4
      %s44 = int_to_ptr.hbm [resolvable:$true] %s43
      %s45 = sshll.u32 [#allocation8], 4
      %s46 = int_to_ptr.vmem [resolvable:$true] %s45
      %51 = dma.hbm_to_vmem [thread:$0]  %s44, 32768, %s46, [#allocation7], 512, 512, 32
    $region13: #{tpu_custom_call.1} parent=1 // pred_fallthru
      _
    // Predicated region
    $region14: #{tpu_custom_call.1} parent=1 // pred_check
      _
    $region15: #{tpu_custom_call.1} parent=1 // pred_check_branch
      %53 = sbr.rel (0) target = $region17
    $region16: #{tpu_custom_call.1} parent=1 // pred_region
      %55 = vsyncadd [#allocation10], 0
      %s57 = sshll.u32 %s3, 4
      %s58 = int_to_ptr.hbm [resolvable:$true] %s57
      %s59 = sshll.u32 [#allocation9], 4
      %s60 = int_to_ptr.vmem [resolvable:$true] %s59
      %62 = dma.hbm_to_vmem [thread:$0]  %s58, 64, %s60, [#allocation10]
    $region17: #{tpu_custom_call.1} parent=1 // pred_fallthru
      _
    // Predicated region
    $region18: #{tpu_custom_call.1} parent=1 // pred_check
      _
    $region19: #{tpu_custom_call.1} parent=1 // pred_check_branch
      %64 = sbr.rel (0) target = $region21
    $region20: #{tpu_custom_call.1} parent=1 // pred_region
      %66 = dma.done [#allocation4], 128
    $region21: #{tpu_custom_call.1} parent=1 // pred_fallthru
      _
    // Predicated region
    $region22: #{tpu_custom_call.1} parent=1 // pred_check
      _
    $region23: #{tpu_custom_call.1} parent=1 // pred_check_branch
      %68 = sbr.rel (0) target = $region25
    $region24: #{tpu_custom_call.1} parent=1 // pred_region
      %70 = dma.done [#allocation7], 256
    $region25: #{tpu_custom_call.1} parent=1 // pred_fallthru
      _
    // Predicated region
    $region26: #{tpu_custom_call.1} parent=1 // pred_check
      _
    $region27: #{tpu_custom_call.1} parent=1 // pred_check_branch
      %72 = sbr.rel (0) target = $region29
    $region28: #{tpu_custom_call.1} parent=1 // pred_region
      %74 = dma.done [#allocation7], 32768
    $region29: #{tpu_custom_call.1} parent=1 // pred_fallthru
      _
    // Predicated region
    $region30: #{tpu_custom_call.1} parent=1 // pred_check
      _
    $region31: #{tpu_custom_call.1} parent=1 // pred_check_branch
      %76 = sbr.rel (0) target = $region33
    $region32: #{tpu_custom_call.1} parent=1 // pred_region
      %78 = dma.done [#allocation10], 64
    $region33: #{tpu_custom_call.1} parent=1 // pred_fallthru
      _
    %v79 = vld [vmem:[#allocation3] sm:$0xf]
    %v80 = vld [vmem:[#allocation3 + $0x4] sm:$0xf]
    %v81 = vld [vmem:[#allocation6] sm:$0xff]
    %v82 = vld [vmem:[#allocation6 + $0x8] sm:$0xff]
    %v83 = vpack.c.bf16 %v82, %v81
    %v84 = vld [vmem:[#allocation8] sm:$0xff]
    %v85 = vld [vmem:[#allocation8 + $0x8] sm:$0xff]
    %v86 = vld [vmem:[#allocation8 + $0x10] sm:$0xff]
    %v87 = vld [vmem:[#allocation8 + $0x18] sm:$0xff]
    %v88 = vld [vmem:[#allocation8 + $0x20] sm:$0xff]
    %v89 = vld [vmem:[#allocation8 + $0x28] sm:$0xff]
    %v90 = vld [vmem:[#allocation8 + $0x30] sm:$0xff]
    %v91 = vld [vmem:[#allocation8 + $0x38] sm:$0xff]
    %v92 = vld [vmem:[#allocation8 + $0x40] sm:$0xff]
    %v93 = vld [vmem:[#allocation8 + $0x48] sm:$0xff]
    %v94 = vld [vmem:[#allocation8 + $0x50] sm:$0xff]
    %v95 = vld [vmem:[#allocation8 + $0x58] sm:$0xff]
    %v96 = vld [vmem:[#allocation8 + $0x60] sm:$0xff]
    %v97 = vld [vmem:[#allocation8 + $0x68] sm:$0xff]
    %v98 = vld [vmem:[#allocation8 + $0x70] sm:$0xff]
    %v99 = vld [vmem:[#allocation8 + $0x78] sm:$0xff]
    %v100 = vld [vmem:[#allocation8 + $0x80] sm:$0xff]
    %v101 = vld [vmem:[#allocation8 + $0x88] sm:$0xff]
    %v102 = vld [vmem:[#allocation8 + $0x90] sm:$0xff]
    %v103 = vld [vmem:[#allocation8 + $0x98] sm:$0xff]
    %v104 = vld [vmem:[#allocation8 + $0xa0] sm:$0xff]
    %v105 = vld [vmem:[#allocation8 + $0xa8] sm:$0xff]
    %v106 = vld [vmem:[#allocation8 + $0xb0] sm:$0xff]
    %v107 = vld [vmem:[#allocation8 + $0xb8] sm:$0xff]
    %v108 = vld [vmem:[#allocation8 + $0xc0] sm:$0xff]
    %v109 = vld [vmem:[#allocation8 + $0xc8] sm:$0xff]
    %v110 = vld [vmem:[#allocation8 + $0xd0] sm:$0xff]
    %v111 = vld [vmem:[#allocation8 + $0xd8] sm:$0xff]
    %v112 = vld [vmem:[#allocation8 + $0xe0] sm:$0xff]
    %v113 = vld [vmem:[#allocation8 + $0xe8] sm:$0xff]
    %v114 = vld [vmem:[#allocation8 + $0xf0] sm:$0xff]
    %v115 = vld [vmem:[#allocation8 + $0xf8] sm:$0xff]
    %v116 = vld [vmem:[#allocation8 + $0x100] sm:$0xff]
    %v117 = vld [vmem:[#allocation8 + $0x108] sm:$0xff]
    %v118 = vld [vmem:[#allocation8 + $0x110] sm:$0xff]
    %v119 = vld [vmem:[#allocation8 + $0x118] sm:$0xff]
    %v120 = vld [vmem:[#allocation8 + $0x120] sm:$0xff]
    %v121 = vld [vmem:[#allocation8 + $0x128] sm:$0xff]
    %v122 = vld [vmem:[#allocation8 + $0x130] sm:$0xff]
    %v123 = vld [vmem:[#allocation8 + $0x138] sm:$0xff]
    %v124 = vld [vmem:[#allocation8 + $0x140] sm:$0xff]
    %v125 = vld [vmem:[#allocation8 + $0x148] sm:$0xff]
    %v126 = vld [vmem:[#allocation8 + $0x150] sm:$0xff]
    %v127 = vld [vmem:[#allocation8 + $0x158] sm:$0xff]
    %v128 = vld [vmem:[#allocation8 + $0x160] sm:$0xff]
    %v129 = vld [vmem:[#allocation8 + $0x168] sm:$0xff]
    %v130 = vld [vmem:[#allocation8 + $0x170] sm:$0xff]
    %v131 = vld [vmem:[#allocation8 + $0x178] sm:$0xff]
    %v132 = vld [vmem:[#allocation8 + $0x180] sm:$0xff]
    %v133 = vld [vmem:[#allocation8 + $0x188] sm:$0xff]
    %v134 = vld [vmem:[#allocation8 + $0x190] sm:$0xff]
    %v135 = vld [vmem:[#allocation8 + $0x198] sm:$0xff]
    %v136 = vld [vmem:[#allocation8 + $0x1a0] sm:$0xff]
    %v137 = vld [vmem:[#allocation8 + $0x1a8] sm:$0xff]
    %v138 = vld [vmem:[#allocation8 + $0x1b0] sm:$0xff]
    %v139 = vld [vmem:[#allocation8 + $0x1b8] sm:$0xff]
    %v140 = vld [vmem:[#allocation8 + $0x1c0] sm:$0xff]
    %v141 = vld [vmem:[#allocation8 + $0x1c8] sm:$0xff]
    %v142 = vld [vmem:[#allocation8 + $0x1d0] sm:$0xff]
    %v143 = vld [vmem:[#allocation8 + $0x1d8] sm:$0xff]
    %v144 = vld [vmem:[#allocation8 + $0x1e0] sm:$0xff]
    %v145 = vld [vmem:[#allocation8 + $0x1e8] sm:$0xff]
    %v146 = vld [vmem:[#allocation8 + $0x1f0] sm:$0xff]
    %v147 = vld [vmem:[#allocation8 + $0x1f8] sm:$0xff]
    %v212 = vunpack.c.l.b16 %v84
    %v213 = vunpack.c.h.b16 %v84
    %v214 = vunpack.c.l.b16 %v85
    %v215 = vunpack.c.h.b16 %v85
    %v216 = vunpack.c.l.b16 %v86
    %v217 = vunpack.c.h.b16 %v86
    %v218 = vunpack.c.l.b16 %v87
    %v219 = vunpack.c.h.b16 %v87
    %v220 = vunpack.c.l.b16 %v88
    %v221 = vunpack.c.h.b16 %v88
    %v222 = vunpack.c.l.b16 %v89
    %v223 = vunpack.c.h.b16 %v89
    %v224 = vunpack.c.l.b16 %v90
    %v225 = vunpack.c.h.b16 %v90
    %v226 = vunpack.c.l.b16 %v91
    %v227 = vunpack.c.h.b16 %v91
    %v228 = vunpack.c.l.b16 %v92
    %v229 = vunpack.c.h.b16 %v92
    %v230 = vunpack.c.l.b16 %v93
    %v231 = vunpack.c.h.b16 %v93
    %v232 = vunpack.c.l.b16 %v94
    %v233 = vunpack.c.h.b16 %v94
    %v234 = vunpack.c.l.b16 %v95
    %v235 = vunpack.c.h.b16 %v95
    %v236 = vunpack.c.l.b16 %v96
    %v237 = vunpack.c.h.b16 %v96
    %v238 = vunpack.c.l.b16 %v97
    %v239 = vunpack.c.h.b16 %v97
    %v240 = vunpack.c.l.b16 %v98
    %v241 = vunpack.c.h.b16 %v98
    %v242 = vunpack.c.l.b16 %v99
    %v243 = vunpack.c.h.b16 %v99
    %v244 = vunpack.c.l.b16 %v100
    %v245 = vunpack.c.h.b16 %v100
    %v246 = vunpack.c.l.b16 %v101
    %v247 = vunpack.c.h.b16 %v101
    %v248 = vunpack.c.l.b16 %v102
    %v249 = vunpack.c.h.b16 %v102
    %v250 = vunpack.c.l.b16 %v103
    %v251 = vunpack.c.h.b16 %v103
    %v252 = vunpack.c.l.b16 %v104
    %v253 = vunpack.c.h.b16 %v104
    %v254 = vunpack.c.l.b16 %v105
    %v255 = vunpack.c.h.b16 %v105
    %v256 = vunpack.c.l.b16 %v106
    %v257 = vunpack.c.h.b16 %v106
    %v258 = vunpack.c.l.b16 %v107
    %v259 = vunpack.c.h.b16 %v107
    %v260 = vunpack.c.l.b16 %v108
    %v261 = vunpack.c.h.b16 %v108
    %v262 = vunpack.c.l.b16 %v109
    %v263 = vunpack.c.h.b16 %v109
    %v264 = vunpack.c.l.b16 %v110
    %v265 = vunpack.c.h.b16 %v110
    %v266 = vunpack.c.l.b16 %v111
    %v267 = vunpack.c.h.b16 %v111
    %v268 = vunpack.c.l.b16 %v112
    %v269 = vunpack.c.h.b16 %v112
    %v270 = vunpack.c.l.b16 %v113
    %v271 = vunpack.c.h.b16 %v113
    %v272 = vunpack.c.l.b16 %v114
    %v273 = vunpack.c.h.b16 %v114
    %v274 = vunpack.c.l.b16 %v115
    %v275 = vunpack.c.h.b16 %v115
    %v276 = vunpack.c.l.b16 %v116
    %v277 = vunpack.c.h.b16 %v116
    %v278 = vunpack.c.l.b16 %v117
    %v279 = vunpack.c.h.b16 %v117
    %v280 = vunpack.c.l.b16 %v118
    %v281 = vunpack.c.h.b16 %v118
    %v282 = vunpack.c.l.b16 %v119
    %v283 = vunpack.c.h.b16 %v119
    %v284 = vunpack.c.l.b16 %v120
    %v285 = vunpack.c.h.b16 %v120
    %v286 = vunpack.c.l.b16 %v121
    %v287 = vunpack.c.h.b16 %v121
    %v288 = vunpack.c.l.b16 %v122
    %v289 = vunpack.c.h.b16 %v122
    %v290 = vunpack.c.l.b16 %v123
    %v291 = vunpack.c.h.b16 %v123
    %v292 = vunpack.c.l.b16 %v124
    %v293 = vunpack.c.h.b16 %v124
    %v294 = vunpack.c.l.b16 %v125
    %v295 = vunpack.c.h.b16 %v125
    %v296 = vunpack.c.l.b16 %v126
    %v297 = vunpack.c.h.b16 %v126
    %v298 = vunpack.c.l.b16 %v127
    %v299 = vunpack.c.h.b16 %v127
    %v300 = vunpack.c.l.b16 %v128
    %v301 = vunpack.c.h.b16 %v128
    %v302 = vunpack.c.l.b16 %v129
    %v303 = vunpack.c.h.b16 %v129
    %v304 = vunpack.c.l.b16 %v130
    %v305 = vunpack.c.h.b16 %v130
    %v306 = vunpack.c.l.b16 %v131
    %v307 = vunpack.c.h.b16 %v131
    %v308 = vunpack.c.l.b16 %v132
    %v309 = vunpack.c.h.b16 %v132
    %v310 = vunpack.c.l.b16 %v133
    %v311 = vunpack.c.h.b16 %v133
    %v312 = vunpack.c.l.b16 %v134
    %v313 = vunpack.c.h.b16 %v134
    %v314 = vunpack.c.l.b16 %v135
    %v315 = vunpack.c.h.b16 %v135
    %v316 = vunpack.c.l.b16 %v136
    %v317 = vunpack.c.h.b16 %v136
    %v318 = vunpack.c.l.b16 %v137
    %v319 = vunpack.c.h.b16 %v137
    %v320 = vunpack.c.l.b16 %v138
    %v321 = vunpack.c.h.b16 %v138
    %v322 = vunpack.c.l.b16 %v139
    %v323 = vunpack.c.h.b16 %v139
    %v324 = vunpack.c.l.b16 %v140
    %v325 = vunpack.c.h.b16 %v140
    %v326 = vunpack.c.l.b16 %v141
    %v327 = vunpack.c.h.b16 %v141
    %v328 = vunpack.c.l.b16 %v142
    %v329 = vunpack.c.h.b16 %v142
    %v330 = vunpack.c.l.b16 %v143
    %v331 = vunpack.c.h.b16 %v143
    %v332 = vunpack.c.l.b16 %v144
    %v333 = vunpack.c.h.b16 %v144
    %v334 = vunpack.c.l.b16 %v145
    %v335 = vunpack.c.h.b16 %v145
    %v336 = vunpack.c.l.b16 %v146
    %v337 = vunpack.c.h.b16 %v146
    %v338 = vunpack.c.l.b16 %v147
    %v339 = vunpack.c.h.b16 %v147
    %v340 = vpack.c.b16 %v220, %v212
    %v341 = vpack.c.b16 %v221, %v213
    %v342 = vpack.c.b16 %v222, %v214
    %v343 = vpack.c.b16 %v223, %v215
    %v344 = vpack.c.b16 %v224, %v216
    %v345 = vpack.c.b16 %v225, %v217
    %v346 = vpack.c.b16 %v226, %v218
    %v347 = vpack.c.b16 %v227, %v219
    %v348 = vpack.c.b16 %v236, %v228
    %v349 = vpack.c.b16 %v237, %v229
    %v350 = vpack.c.b16 %v238, %v230
    %v351 = vpack.c.b16 %v239, %v231
    %v352 = vpack.c.b16 %v240, %v232
    %v353 = vpack.c.b16 %v241, %v233
    %v354 = vpack.c.b16 %v242, %v234
    %v355 = vpack.c.b16 %v243, %v235
    %v356 = vpack.c.b16 %v252, %v244
    %v357 = vpack.c.b16 %v253, %v245
    %v358 = vpack.c.b16 %v254, %v246
    %v359 = vpack.c.b16 %v255, %v247
    %v360 = vpack.c.b16 %v256, %v248
    %v361 = vpack.c.b16 %v257, %v249
    %v362 = vpack.c.b16 %v258, %v250
    %v363 = vpack.c.b16 %v259, %v251
    %v364 = vpack.c.b16 %v268, %v260
    %v365 = vpack.c.b16 %v269, %v261
    %v366 = vpack.c.b16 %v270, %v262
    %v367 = vpack.c.b16 %v271, %v263
    %v368 = vpack.c.b16 %v272, %v264
    %v369 = vpack.c.b16 %v273, %v265
    %v370 = vpack.c.b16 %v274, %v266
    %v371 = vpack.c.b16 %v275, %v267
    %v372 = vpack.c.b16 %v284, %v276
    %v373 = vpack.c.b16 %v285, %v277
    %v374 = vpack.c.b16 %v286, %v278
    %v375 = vpack.c.b16 %v287, %v279
    %v376 = vpack.c.b16 %v288, %v280
    %v377 = vpack.c.b16 %v289, %v281
    %v378 = vpack.c.b16 %v290, %v282
    %v379 = vpack.c.b16 %v291, %v283
    %v380 = vpack.c.b16 %v300, %v292
    %v381 = vpack.c.b16 %v301, %v293
    %v382 = vpack.c.b16 %v302, %v294
    %v383 = vpack.c.b16 %v303, %v295
    %v384 = vpack.c.b16 %v304, %v296
    %v385 = vpack.c.b16 %v305, %v297
    %v386 = vpack.c.b16 %v306, %v298
    %v387 = vpack.c.b16 %v307, %v299
    %v388 = vpack.c.b16 %v316, %v308
    %v389 = vpack.c.b16 %v317, %v309
    %v390 = vpack.c.b16 %v318, %v310
    %v391 = vpack.c.b16 %v319, %v311
    %v392 = vpack.c.b16 %v320, %v312
    %v393 = vpack.c.b16 %v321, %v313
    %v394 = vpack.c.b16 %v322, %v314
    %v395 = vpack.c.b16 %v323, %v315
    %v396 = vpack.c.b16 %v332, %v324
    %v397 = vpack.c.b16 %v333, %v325
    %v398 = vpack.c.b16 %v334, %v326
    %v399 = vpack.c.b16 %v335, %v327
    %v400 = vpack.c.b16 %v336, %v328
    %v401 = vpack.c.b16 %v337, %v329
    %v402 = vpack.c.b16 %v338, %v330
    %v403 = vpack.c.b16 %v339, %v331
    %468 = vmatpush.bf16.msra.mxu0 %v396
    %469 = vmatpush.bf16.msra.mxu0 %v388
    %470 = vmatpush.bf16.msra.mxu0 %v380
    %471 = vmatpush.bf16.msra.mxu0 %v372
    %472 = vmatpush.bf16.msra.mxu0 %v364
    %473 = vmatpush.bf16.msra.mxu0 %v356
    %474 = vmatpush.bf16.msra.mxu0 %v348
    %475 = vmatpush.bf16.msra.mxu0 %v340
    %476 = vmatmul.bf16.gmra.mxu0 %v83
    %v477 = vpop.f32.mrf.mxu0
    %v478 = vadd.f32 0.0, %v477
    %v479 = vpop.f32.mrf.mxu0
    %v480 = vadd.f32 0.0, %v479
    %481 = vdwg.mxu0
    %482 = vmatpush.bf16.msra.mxu0 %v397
    %483 = vmatpush.bf16.msra.mxu0 %v389
    %484 = vmatpush.bf16.msra.mxu0 %v381
    %485 = vmatpush.bf16.msra.mxu0 %v373
    %486 = vmatpush.bf16.msra.mxu0 %v365
    %487 = vmatpush.bf16.msra.mxu0 %v357
    %488 = vmatpush.bf16.msra.mxu0 %v349
    %489 = vmatpush.bf16.msra.mxu0 %v341
    %490 = vmatmul.bf16.gmra.mxu0 %v83
    %v491 = vpop.f32.mrf.mxu0
    %v492 = vadd.f32 0.0, %v491
    %v493 = vpop.f32.mrf.mxu0
    %v494 = vadd.f32 0.0, %v493
    %495 = vdwg.mxu0
    %496 = vmatpush.bf16.msra.mxu0 %v398
    %497 = vmatpush.bf16.msra.mxu0 %v390
    %498 = vmatpush.bf16.msra.mxu0 %v382
    %499 = vmatpush.bf16.msra.mxu0 %v374
    %500 = vmatpush.bf16.msra.mxu0 %v366
    %501 = vmatpush.bf16.msra.mxu0 %v358
    %502 = vmatpush.bf16.msra.mxu0 %v350
    %503 = vmatpush.bf16.msra.mxu0 %v342
    %504 = vmatmul.bf16.gmra.mxu0 %v83
    %v505 = vpop.f32.mrf.mxu0
    %v506 = vadd.f32 0.0, %v505
    %v507 = vpop.f32.mrf.mxu0
    %v508 = vadd.f32 0.0, %v507
    %509 = vdwg.mxu0
    %510 = vmatpush.bf16.msra.mxu0 %v399
    %511 = vmatpush.bf16.msra.mxu0 %v391
    %512 = vmatpush.bf16.msra.mxu0 %v383
    %513 = vmatpush.bf16.msra.mxu0 %v375
    %514 = vmatpush.bf16.msra.mxu0 %v367
    %515 = vmatpush.bf16.msra.mxu0 %v359
    %516 = vmatpush.bf16.msra.mxu0 %v351
    %517 = vmatpush.bf16.msra.mxu0 %v343
    %518 = vmatmul.bf16.gmra.mxu0 %v83
    %v519 = vpop.f32.mrf.mxu0
    %v520 = vadd.f32 0.0, %v519
    %v521 = vpop.f32.mrf.mxu0
    %v522 = vadd.f32 0.0, %v521
    %523 = vdwg.mxu0
    %524 = vmatpush.bf16.msra.mxu0 %v400
    %525 = vmatpush.bf16.msra.mxu0 %v392
    %526 = vmatpush.bf16.msra.mxu0 %v384
    %527 = vmatpush.bf16.msra.mxu0 %v376
    %528 = vmatpush.bf16.msra.mxu0 %v368
    %529 = vmatpush.bf16.msra.mxu0 %v360
    %530 = vmatpush.bf16.msra.mxu0 %v352
    %531 = vmatpush.bf16.msra.mxu0 %v344
    %532 = vmatmul.bf16.gmra.mxu0 %v83
    %v533 = vpop.f32.mrf.mxu0
    %v534 = vadd.f32 0.0, %v533
    %v535 = vpop.f32.mrf.mxu0
    %v536 = vadd.f32 0.0, %v535
    %537 = vdwg.mxu0
    %538 = vmatpush.bf16.msra.mxu0 %v401
    %539 = vmatpush.bf16.msra.mxu0 %v393
    %540 = vmatpush.bf16.msra.mxu0 %v385
    %541 = vmatpush.bf16.msra.mxu0 %v377
    %542 = vmatpush.bf16.msra.mxu0 %v369
    %543 = vmatpush.bf16.msra.mxu0 %v361
    %544 = vmatpush.bf16.msra.mxu0 %v353
    %545 = vmatpush.bf16.msra.mxu0 %v345
    %546 = vmatmul.bf16.gmra.mxu0 %v83
    %v547 = vpop.f32.mrf.mxu0
    %v548 = vadd.f32 0.0, %v547
    %v549 = vpop.f32.mrf.mxu0
    %v550 = vadd.f32 0.0, %v549
    %551 = vdwg.mxu0
    %552 = vmatpush.bf16.msra.mxu0 %v402
    %553 = vmatpush.bf16.msra.mxu0 %v394
    %554 = vmatpush.bf16.msra.mxu0 %v386
    %555 = vmatpush.bf16.msra.mxu0 %v378
    %556 = vmatpush.bf16.msra.mxu0 %v370
    %557 = vmatpush.bf16.msra.mxu0 %v362
    %558 = vmatpush.bf16.msra.mxu0 %v354
    %559 = vmatpush.bf16.msra.mxu0 %v346
    %560 = vmatmul.bf16.gmra.mxu0 %v83
    %v561 = vpop.f32.mrf.mxu0
    %v562 = vadd.f32 0.0, %v561
    %v563 = vpop.f32.mrf.mxu0
    %v564 = vadd.f32 0.0, %v563
    %565 = vdwg.mxu0
    %566 = vmatpush.bf16.msra.mxu0 %v403
    %567 = vmatpush.bf16.msra.mxu0 %v395
    %568 = vmatpush.bf16.msra.mxu0 %v387
    %569 = vmatpush.bf16.msra.mxu0 %v379
    %570 = vmatpush.bf16.msra.mxu0 %v371
    %571 = vmatpush.bf16.msra.mxu0 %v363
    %572 = vmatpush.bf16.msra.mxu0 %v355
    %573 = vmatpush.bf16.msra.mxu0 %v347
    %574 = vmatmul.bf16.gmra.mxu0 %v83
    %v575 = vpop.f32.mrf.mxu0
    %v576 = vadd.f32 0.0, %v575
    %v577 = vpop.f32.mrf.mxu0
    %v578 = vadd.f32 0.0, %v577
    %579 = vdwg.mxu0
    %v580 = vpack.c.bf16 %v478, %v478
    %v581 = vpack.c.bf16 %v480, %v480
    %582 = vst [vmem:[#allocation2] sm:$0xf] %v580
    %583 = vst [vmem:[#allocation2 + $0x4] sm:$0xf] %v581
    %v584 = vpack.c.bf16 %v492, %v492
    %v585 = vpack.c.bf16 %v494, %v494
    %586 = vst [vmem:[#allocation2 + $0x8] sm:$0xf] %v584
    %587 = vst [vmem:[#allocation2 + $0xc] sm:$0xf] %v585
    %v588 = vpack.c.bf16 %v506, %v506
    %v589 = vpack.c.bf16 %v508, %v508
    %590 = vst [vmem:[#allocation2 + $0x10] sm:$0xf] %v588
    %591 = vst [vmem:[#allocation2 + $0x14] sm:$0xf] %v589
    %v592 = vpack.c.bf16 %v520, %v520
    %v593 = vpack.c.bf16 %v522, %v522
    %594 = vst [vmem:[#allocation2 + $0x18] sm:$0xf] %v592
    %595 = vst [vmem:[#allocation2 + $0x1c] sm:$0xf] %v593
    %v596 = vpack.c.bf16 %v534, %v534
    %v597 = vpack.c.bf16 %v536, %v536
    %598 = vst [vmem:[#allocation2 + $0x20] sm:$0xf] %v596
    %599 = vst [vmem:[#allocation2 + $0x24] sm:$0xf] %v597
    %v600 = vpack.c.bf16 %v548, %v548
    %v601 = vpack.c.bf16 %v550, %v550
    %602 = vst [vmem:[#allocation2 + $0x28] sm:$0xf] %v600
    %603 = vst [vmem:[#allocation2 + $0x2c] sm:$0xf] %v601
    %v604 = vpack.c.bf16 %v562, %v562
    %v605 = vpack.c.bf16 %v564, %v564
    %606 = vst [vmem:[#allocation2 + $0x30] sm:$0xf] %v604
    %607 = vst [vmem:[#allocation2 + $0x34] sm:$0xf] %v605
    %v608 = vpack.c.bf16 %v576, %v576
    %v609 = vpack.c.bf16 %v578, %v578
    %610 = vst [vmem:[#allocation2 + $0x38] sm:$0xf] %v608
    %611 = vst [vmem:[#allocation2 + $0x3c] sm:$0xf] %v609
    %v612 = vld [vmem:[#allocation2] sm:$0xf]
    %v613 = vld [vmem:[#allocation2 + $0x4] sm:$0xf]
    %v614 = vld [vmem:[#allocation2 + $0x8] sm:$0xf]
    %v615 = vld [vmem:[#allocation2 + $0xc] sm:$0xf]
    %v616 = vld [vmem:[#allocation2 + $0x10] sm:$0xf]
    %v617 = vld [vmem:[#allocation2 + $0x14] sm:$0xf]
    %v618 = vld [vmem:[#allocation2 + $0x18] sm:$0xf]
    %v619 = vld [vmem:[#allocation2 + $0x1c] sm:$0xf]
    %v620 = vld [vmem:[#allocation2 + $0x20] sm:$0xf]
    %v621 = vld [vmem:[#allocation2 + $0x24] sm:$0xf]
    %v622 = vld [vmem:[#allocation2 + $0x28] sm:$0xf]
    %v623 = vld [vmem:[#allocation2 + $0x2c] sm:$0xf]
    %v624 = vld [vmem:[#allocation2 + $0x30] sm:$0xf]
    %v625 = vld [vmem:[#allocation2 + $0x34] sm:$0xf]
    %v626 = vld [vmem:[#allocation2 + $0x38] sm:$0xf]
    %v627 = vld [vmem:[#allocation2 + $0x3c] sm:$0xf]
    %v628 = vld [vmem:[#allocation9] sm:$0x1]
    %v629 = vperm.slane %v628, 0
    %v632 = vunpack.c.l.b16 %v79
    %v633 = vunpack.c.l.b16 %v80
    %v634 = vpack.c.b16 %v633, %v632
    %v652 = vunpack.c.l.b16 %v612
    %v653 = vunpack.c.l.b16 %v613
    %v654 = vunpack.c.l.b16 %v614
    %v655 = vunpack.c.l.b16 %v615
    %v656 = vunpack.c.l.b16 %v616
    %v657 = vunpack.c.l.b16 %v617
    %v658 = vunpack.c.l.b16 %v618
    %v659 = vunpack.c.l.b16 %v619
    %v660 = vunpack.c.l.b16 %v620
    %v661 = vunpack.c.l.b16 %v621
    %v662 = vunpack.c.l.b16 %v622
    %v663 = vunpack.c.l.b16 %v623
    %v664 = vunpack.c.l.b16 %v624
    %v665 = vunpack.c.l.b16 %v625
    %v666 = vunpack.c.l.b16 %v626
    %v667 = vunpack.c.l.b16 %v627
    %v668 = vpack.c.b16 %v653, %v652
    %v669 = vpack.c.b16 %v655, %v654
    %v670 = vpack.c.b16 %v657, %v656
    %v671 = vpack.c.b16 %v659, %v658
    %v672 = vpack.c.b16 %v661, %v660
    %v673 = vpack.c.b16 %v663, %v662
    %v674 = vpack.c.b16 %v665, %v664
    %v675 = vpack.c.b16 %v667, %v666
    %684 = vmatpush.bf16.msra.mxu0 %v675
    %685 = vmatpush.bf16.msra.mxu0 %v674
    %686 = vmatpush.bf16.msra.mxu0 %v673
    %687 = vmatpush.bf16.msra.mxu0 %v672
    %688 = vmatpush.bf16.msra.mxu0 %v671
    %689 = vmatpush.bf16.msra.mxu0 %v670
    %690 = vmatpush.bf16.msra.mxu0 %v669
    %691 = vmatpush.bf16.msra.mxu0 %v668
    %692 = vmatmul.bf16.gmra.mxu0 %v634
    %v693 = vpop.f32.mrf.mxu0
    %v694 = vadd.f32 %v629, %v693
    %v695 = vpop.f32.mrf.mxu0
    %v696 = vadd.f32 %v629, %v695
    %697 = vdwg.mxu0
    %v698 = vmax.f32 %v694, 0.0
    %v699 = vmax.f32 %v696, 0.0
    %v700 = vpack.c.bf16 %v699, %v698
    %s701 = scalar_lea.vmem [#allocation8], 512
    %v702 = vld [vmem:[%s701] sm:$0xff]
    %v703 = vld [vmem:[%s701 + $0x8] sm:$0xff]
    %v704 = vld [vmem:[%s701 + $0x10] sm:$0xff]
    %v705 = vld [vmem:[%s701 + $0x18] sm:$0xff]
    %v706 = vld [vmem:[%s701 + $0x20] sm:$0xff]
    %v707 = vld [vmem:[%s701 + $0x28] sm:$0xff]
    %v708 = vld [vmem:[%s701 + $0x30] sm:$0xff]
    %v709 = vld [vmem:[%s701 + $0x38] sm:$0xff]
    %v710 = vld [vmem:[%s701 + $0x40] sm:$0xff]
    %v711 = vld [vmem:[%s701 + $0x48] sm:$0xff]
    %v712 = vld [vmem:[%s701 + $0x50] sm:$0xff]
    %v713 = vld [vmem:[%s701 + $0x58] sm:$0xff]
    %v714 = vld [vmem:[%s701 + $0x60] sm:$0xff]
    %v715 = vld [vmem:[%s701 + $0x68] sm:$0xff]
    %v716 = vld [vmem:[%s701 + $0x70] sm:$0xff]
    %v717 = vld [vmem:[%s701 + $0x78] sm:$0xff]
    %v718 = vld [vmem:[%s701 + $0x80] sm:$0xff]
    %v719 = vld [vmem:[%s701 + $0x88] sm:$0xff]
    %v720 = vld [vmem:[%s701 + $0x90] sm:$0xff]
    %v721 = vld [vmem:[%s701 + $0x98] sm:$0xff]
    %v722 = vld [vmem:[%s701 + $0xa0] sm:$0xff]
    %v723 = vld [vmem:[%s701 + $0xa8] sm:$0xff]
    %v724 = vld [vmem:[%s701 + $0xb0] sm:$0xff]
    %v725 = vld [vmem:[%s701 + $0xb8] sm:$0xff]
    %v726 = vld [vmem:[%s701 + $0xc0] sm:$0xff]
    %v727 = vld [vmem:[%s701 + $0xc8] sm:$0xff]
    %v728 = vld [vmem:[%s701 + $0xd0] sm:$0xff]
    %v729 = vld [vmem:[%s701 + $0xd8] sm:$0xff]
    %v730 = vld [vmem:[%s701 + $0xe0] sm:$0xff]
    %v731 = vld [vmem:[%s701 + $0xe8] sm:$0xff]
    %v732 = vld [vmem:[%s701 + $0xf0] sm:$0xff]
    %v733 = vld [vmem:[%s701 + $0xf8] sm:$0xff]
    %v734 = vld [vmem:[%s701 + $0x100] sm:$0xff]
    %v735 = vld [vmem:[%s701 + $0x108] sm:$0xff]
    %v736 = vld [vmem:[%s701 + $0x110] sm:$0xff]
    %v737 = vld [vmem:[%s701 + $0x118] sm:$0xff]
    %v738 = vld [vmem:[%s701 + $0x120] sm:$0xff]
    %v739 = vld [vmem:[%s701 + $0x128] sm:$0xff]
    %v740 = vld [vmem:[%s701 + $0x130] sm:$0xff]
    %v741 = vld [vmem:[%s701 + $0x138] sm:$0xff]
    %v742 = vld [vmem:[%s701 + $0x140] sm:$0xff]
    %v743 = vld [vmem:[%s701 + $0x148] sm:$0xff]
    %v744 = vld [vmem:[%s701 + $0x150] sm:$0xff]
    %v745 = vld [vmem:[%s701 + $0x158] sm:$0xff]
    %v746 = vld [vmem:[%s701 + $0x160] sm:$0xff]
    %v747 = vld [vmem:[%s701 + $0x168] sm:$0xff]
    %v748 = vld [vmem:[%s701 + $0x170] sm:$0xff]
    %v749 = vld [vmem:[%s701 + $0x178] sm:$0xff]
    %v750 = vld [vmem:[%s701 + $0x180] sm:$0xff]
    %v751 = vld [vmem:[%s701 + $0x188] sm:$0xff]
    %v752 = vld [vmem:[%s701 + $0x190] sm:$0xff]
    %v753 = vld [vmem:[%s701 + $0x198] sm:$0xff]
    %v754 = vld [vmem:[%s701 + $0x1a0] sm:$0xff]
    %v755 = vld [vmem:[%s701 + $0x1a8] sm:$0xff]
    %v756 = vld [vmem:[%s701 + $0x1b0] sm:$0xff]
    %v757 = vld [vmem:[%s701 + $0x1b8] sm:$0xff]
    %v758 = vld [vmem:[%s701 + $0x1c0] sm:$0xff]
    %v759 = vld [vmem:[%s701 + $0x1c8] sm:$0xff]
    %v760 = vld [vmem:[%s701 + $0x1d0] sm:$0xff]
    %v761 = vld [vmem:[%s701 + $0x1d8] sm:$0xff]
    %v762 = vld [vmem:[%s701 + $0x1e0] sm:$0xff]
    %v763 = vld [vmem:[%s701 + $0x1e8] sm:$0xff]
    %v764 = vld [vmem:[%s701 + $0x1f0] sm:$0xff]
    %v765 = vld [vmem:[%s701 + $0x1f8] sm:$0xff]
    %v830 = vunpack.c.l.b16 %v702
    %v831 = vunpack.c.h.b16 %v702
    %v832 = vunpack.c.l.b16 %v703
    %v833 = vunpack.c.h.b16 %v703
    %v834 = vunpack.c.l.b16 %v704
    %v835 = vunpack.c.h.b16 %v704
    %v836 = vunpack.c.l.b16 %v705
    %v837 = vunpack.c.h.b16 %v705
    %v838 = vunpack.c.l.b16 %v706
    %v839 = vunpack.c.h.b16 %v706
    %v840 = vunpack.c.l.b16 %v707
    %v841 = vunpack.c.h.b16 %v707
    %v842 = vunpack.c.l.b16 %v708
    %v843 = vunpack.c.h.b16 %v708
    %v844 = vunpack.c.l.b16 %v709
    %v845 = vunpack.c.h.b16 %v709
    %v846 = vunpack.c.l.b16 %v710
    %v847 = vunpack.c.h.b16 %v710
    %v848 = vunpack.c.l.b16 %v711
    %v849 = vunpack.c.h.b16 %v711
    %v850 = vunpack.c.l.b16 %v712
    %v851 = vunpack.c.h.b16 %v712
    %v852 = vunpack.c.l.b16 %v713
    %v853 = vunpack.c.h.b16 %v713
    %v854 = vunpack.c.l.b16 %v714
    %v855 = vunpack.c.h.b16 %v714
    %v856 = vunpack.c.l.b16 %v715
    %v857 = vunpack.c.h.b16 %v715
    %v858 = vunpack.c.l.b16 %v716
    %v859 = vunpack.c.h.b16 %v716
    %v860 = vunpack.c.l.b16 %v717
    %v861 = vunpack.c.h.b16 %v717
    %v862 = vunpack.c.l.b16 %v718
    %v863 = vunpack.c.h.b16 %v718
    %v864 = vunpack.c.l.b16 %v719
    %v865 = vunpack.c.h.b16 %v719
    %v866 = vunpack.c.l.b16 %v720
    %v867 = vunpack.c.h.b16 %v720
    %v868 = vunpack.c.l.b16 %v721
    %v869 = vunpack.c.h.b16 %v721
    %v870 = vunpack.c.l.b16 %v722
    %v871 = vunpack.c.h.b16 %v722
    %v872 = vunpack.c.l.b16 %v723
    %v873 = vunpack.c.h.b16 %v723
    %v874 = vunpack.c.l.b16 %v724
    %v875 = vunpack.c.h.b16 %v724
    %v876 = vunpack.c.l.b16 %v725
    %v877 = vunpack.c.h.b16 %v725
    %v878 = vunpack.c.l.b16 %v726
    %v879 = vunpack.c.h.b16 %v726
    %v880 = vunpack.c.l.b16 %v727
    %v881 = vunpack.c.h.b16 %v727
    %v882 = vunpack.c.l.b16 %v728
    %v883 = vunpack.c.h.b16 %v728
    %v884 = vunpack.c.l.b16 %v729
    %v885 = vunpack.c.h.b16 %v729
    %v886 = vunpack.c.l.b16 %v730
    %v887 = vunpack.c.h.b16 %v730
    %v888 = vunpack.c.l.b16 %v731
    %v889 = vunpack.c.h.b16 %v731
    %v890 = vunpack.c.l.b16 %v732
    %v891 = vunpack.c.h.b16 %v732
    %v892 = vunpack.c.l.b16 %v733
    %v893 = vunpack.c.h.b16 %v733
    %v894 = vunpack.c.l.b16 %v734
    %v895 = vunpack.c.h.b16 %v734
    %v896 = vunpack.c.l.b16 %v735
    %v897 = vunpack.c.h.b16 %v735
    %v898 = vunpack.c.l.b16 %v736
    %v899 = vunpack.c.h.b16 %v736
    %v900 = vunpack.c.l.b16 %v737
    %v901 = vunpack.c.h.b16 %v737
    %v902 = vunpack.c.l.b16 %v738
    %v903 = vunpack.c.h.b16 %v738
    %v904 = vunpack.c.l.b16 %v739
    %v905 = vunpack.c.h.b16 %v739
    %v906 = vunpack.c.l.b16 %v740
    %v907 = vunpack.c.h.b16 %v740
    %v908 = vunpack.c.l.b16 %v741
    %v909 = vunpack.c.h.b16 %v741
    %v910 = vunpack.c.l.b16 %v742
    %v911 = vunpack.c.h.b16 %v742
    %v912 = vunpack.c.l.b16 %v743
    %v913 = vunpack.c.h.b16 %v743
    %v914 = vunpack.c.l.b16 %v744
    %v915 = vunpack.c.h.b16 %v744
    %v916 = vunpack.c.l.b16 %v745
    %v917 = vunpack.c.h.b16 %v745
    %v918 = vunpack.c.l.b16 %v746
    %v919 = vunpack.c.h.b16 %v746
    %v920 = vunpack.c.l.b16 %v747
    %v921 = vunpack.c.h.b16 %v747
    %v922 = vunpack.c.l.b16 %v748
    %v923 = vunpack.c.h.b16 %v748
    %v924 = vunpack.c.l.b16 %v749
    %v925 = vunpack.c.h.b16 %v749
    %v926 = vunpack.c.l.b16 %v750
    %v927 = vunpack.c.h.b16 %v750
    %v928 = vunpack.c.l.b16 %v751
    %v929 = vunpack.c.h.b16 %v751
    %v930 = vunpack.c.l.b16 %v752
    %v931 = vunpack.c.h.b16 %v752
    %v932 = vunpack.c.l.b16 %v753
    %v933 = vunpack.c.h.b16 %v753
    %v934 = vunpack.c.l.b16 %v754
    %v935 = vunpack.c.h.b16 %v754
    %v936 = vunpack.c.l.b16 %v755
    %v937 = vunpack.c.h.b16 %v755
    %v938 = vunpack.c.l.b16 %v756
    %v939 = vunpack.c.h.b16 %v756
    %v940 = vunpack.c.l.b16 %v757
    %v941 = vunpack.c.h.b16 %v757
    %v942 = vunpack.c.l.b16 %v758
    %v943 = vunpack.c.h.b16 %v758
    %v944 = vunpack.c.l.b16 %v759
    %v945 = vunpack.c.h.b16 %v759
    %v946 = vunpack.c.l.b16 %v760
    %v947 = vunpack.c.h.b16 %v760
    %v948 = vunpack.c.l.b16 %v761
    %v949 = vunpack.c.h.b16 %v761
    %v950 = vunpack.c.l.b16 %v762
    %v951 = vunpack.c.h.b16 %v762
    %v952 = vunpack.c.l.b16 %v763
    %v953 = vunpack.c.h.b16 %v763
    %v954 = vunpack.c.l.b16 %v764
    %v955 = vunpack.c.h.b16 %v764
    %v956 = vunpack.c.l.b16 %v765
    %v957 = vunpack.c.h.b16 %v765
    %v958 = vpack.c.b16 %v838, %v830
    %v959 = vpack.c.b16 %v839, %v831
    %v960 = vpack.c.b16 %v840, %v832
    %v961 = vpack.c.b16 %v841, %v833
    %v962 = vpack.c.b16 %v842, %v834
    %v963 = vpack.c.b16 %v843, %v835
    %v964 = vpack.c.b16 %v844, %v836
    %v965 = vpack.c.b16 %v845, %v837
    %v966 = vpack.c.b16 %v854, %v846
    %v967 = vpack.c.b16 %v855, %v847
    %v968 = vpack.c.b16 %v856, %v848
    %v969 = vpack.c.b16 %v857, %v849
    %v970 = vpack.c.b16 %v858, %v850
    %v971 = vpack.c.b16 %v859, %v851
    %v972 = vpack.c.b16 %v860, %v852
    %v973 = vpack.c.b16 %v861, %v853
    %v974 = vpack.c.b16 %v870, %v862
    %v975 = vpack.c.b16 %v871, %v863
    %v976 = vpack.c.b16 %v872, %v864
    %v977 = vpack.c.b16 %v873, %v865
    %v978 = vpack.c.b16 %v874, %v866
    %v979 = vpack.c.b16 %v875, %v867
    %v980 = vpack.c.b16 %v876, %v868
    %v981 = vpack.c.b16 %v877, %v869
    %v982 = vpack.c.b16 %v886, %v878
    %v983 = vpack.c.b16 %v887, %v879
    %v984 = vpack.c.b16 %v888, %v880
    %v985 = vpack.c.b16 %v889, %v881
    %v986 = vpack.c.b16 %v890, %v882
    %v987 = vpack.c.b16 %v891, %v883
    %v988 = vpack.c.b16 %v892, %v884
    %v989 = vpack.c.b16 %v893, %v885
    %v990 = vpack.c.b16 %v902, %v894
    %v991 = vpack.c.b16 %v903, %v895
    %v992 = vpack.c.b16 %v904, %v896
    %v993 = vpack.c.b16 %v905, %v897
    %v994 = vpack.c.b16 %v906, %v898
    %v995 = vpack.c.b16 %v907, %v899
    %v996 = vpack.c.b16 %v908, %v900
    %v997 = vpack.c.b16 %v909, %v901
    %v998 = vpack.c.b16 %v918, %v910
    %v999 = vpack.c.b16 %v919, %v911
    %v1000 = vpack.c.b16 %v920, %v912
    %v1001 = vpack.c.b16 %v921, %v913
    %v1002 = vpack.c.b16 %v922, %v914
    %v1003 = vpack.c.b16 %v923, %v915
    %v1004 = vpack.c.b16 %v924, %v916
    %v1005 = vpack.c.b16 %v925, %v917
    %v1006 = vpack.c.b16 %v934, %v926
    %v1007 = vpack.c.b16 %v935, %v927
    %v1008 = vpack.c.b16 %v936, %v928
    %v1009 = vpack.c.b16 %v937, %v929
    %v1010 = vpack.c.b16 %v938, %v930
    %v1011 = vpack.c.b16 %v939, %v931
    %v1012 = vpack.c.b16 %v940, %v932
    %v1013 = vpack.c.b16 %v941, %v933
    %v1014 = vpack.c.b16 %v950, %v942
    %v1015 = vpack.c.b16 %v951, %v943
    %v1016 = vpack.c.b16 %v952, %v944
    %v1017 = vpack.c.b16 %v953, %v945
    %v1018 = vpack.c.b16 %v954, %v946
    %v1019 = vpack.c.b16 %v955, %v947
    %v1020 = vpack.c.b16 %v956, %v948
    %v1021 = vpack.c.b16 %v957, %v949
    %1086 = vmatpush.bf16.msra.mxu0 %v1014
    %1087 = vmatpush.bf16.msra.mxu0 %v1006
    %1088 = vmatpush.bf16.msra.mxu0 %v998
    %1089 = vmatpush.bf16.msra.mxu0 %v990
    %1090 = vmatpush.bf16.msra.mxu0 %v982
    %1091 = vmatpush.bf16.msra.mxu0 %v974
    %1092 = vmatpush.bf16.msra.mxu0 %v966
    %1093 = vmatpush.bf16.msra.mxu0 %v958
    %1094 = vmatmul.bf16.gmra.mxu0 %v700
    %v1095 = vpop.f32.mrf.mxu0
    %v1096 = vadd.f32 0.0, %v1095
    %v1097 = vpop.f32.mrf.mxu0
    %v1098 = vadd.f32 0.0, %v1097
    %1099 = vdwg.mxu0
    %1100 = vmatpush.bf16.msra.mxu0 %v1015
    %1101 = vmatpush.bf16.msra.mxu0 %v1007
    %1102 = vmatpush.bf16.msra.mxu0 %v999
    %1103 = vmatpush.bf16.msra.mxu0 %v991
    %1104 = vmatpush.bf16.msra.mxu0 %v983
    %1105 = vmatpush.bf16.msra.mxu0 %v975
    %1106 = vmatpush.bf16.msra.mxu0 %v967
    %1107 = vmatpush.bf16.msra.mxu0 %v959
    %1108 = vmatmul.bf16.gmra.mxu0 %v700
    %v1109 = vpop.f32.mrf.mxu0
    %v1110 = vadd.f32 0.0, %v1109
    %v1111 = vpop.f32.mrf.mxu0
    %v1112 = vadd.f32 0.0, %v1111
    %1113 = vdwg.mxu0
    %1114 = vmatpush.bf16.msra.mxu0 %v1016
    %1115 = vmatpush.bf16.msra.mxu0 %v1008
    %1116 = vmatpush.bf16.msra.mxu0 %v1000
    %1117 = vmatpush.bf16.msra.mxu0 %v992
    %1118 = vmatpush.bf16.msra.mxu0 %v984
    %1119 = vmatpush.bf16.msra.mxu0 %v976
    %1120 = vmatpush.bf16.msra.mxu0 %v968
    %1121 = vmatpush.bf16.msra.mxu0 %v960
    %1122 = vmatmul.bf16.gmra.mxu0 %v700
    %v1123 = vpop.f32.mrf.mxu0
    %v1124 = vadd.f32 0.0, %v1123
    %v1125 = vpop.f32.mrf.mxu0
    %v1126 = vadd.f32 0.0, %v1125
    %1127 = vdwg.mxu0
    %1128 = vmatpush.bf16.msra.mxu0 %v1017
    %1129 = vmatpush.bf16.msra.mxu0 %v1009
    %1130 = vmatpush.bf16.msra.mxu0 %v1001
    %1131 = vmatpush.bf16.msra.mxu0 %v993
    %1132 = vmatpush.bf16.msra.mxu0 %v985
    %1133 = vmatpush.bf16.msra.mxu0 %v977
    %1134 = vmatpush.bf16.msra.mxu0 %v969
    %1135 = vmatpush.bf16.msra.mxu0 %v961
    %1136 = vmatmul.bf16.gmra.mxu0 %v700
    %v1137 = vpop.f32.mrf.mxu0
    %v1138 = vadd.f32 0.0, %v1137
    %v1139 = vpop.f32.mrf.mxu0
    %v1140 = vadd.f32 0.0, %v1139
    %1141 = vdwg.mxu0
    %1142 = vmatpush.bf16.msra.mxu0 %v1018
    %1143 = vmatpush.bf16.msra.mxu0 %v1010
    %1144 = vmatpush.bf16.msra.mxu0 %v1002
    %1145 = vmatpush.bf16.msra.mxu0 %v994
    %1146 = vmatpush.bf16.msra.mxu0 %v986
    %1147 = vmatpush.bf16.msra.mxu0 %v978
    %1148 = vmatpush.bf16.msra.mxu0 %v970
    %1149 = vmatpush.bf16.msra.mxu0 %v962
    %1150 = vmatmul.bf16.gmra.mxu0 %v700
    %v1151 = vpop.f32.mrf.mxu0
    %v1152 = vadd.f32 0.0, %v1151
    %v1153 = vpop.f32.mrf.mxu0
    %v1154 = vadd.f32 0.0, %v1153
    %1155 = vdwg.mxu0
    %1156 = vmatpush.bf16.msra.mxu0 %v1019
    %1157 = vmatpush.bf16.msra.mxu0 %v1011
    %1158 = vmatpush.bf16.msra.mxu0 %v1003
    %1159 = vmatpush.bf16.msra.mxu0 %v995
    %1160 = vmatpush.bf16.msra.mxu0 %v987
    %1161 = vmatpush.bf16.msra.mxu0 %v979
    %1162 = vmatpush.bf16.msra.mxu0 %v971
    %1163 = vmatpush.bf16.msra.mxu0 %v963
    %1164 = vmatmul.bf16.gmra.mxu0 %v700
    %v1165 = vpop.f32.mrf.mxu0
    %v1166 = vadd.f32 0.0, %v1165
    %v1167 = vpop.f32.mrf.mxu0
    %v1168 = vadd.f32 0.0, %v1167
    %1169 = vdwg.mxu0
    %1170 = vmatpush.bf16.msra.mxu0 %v1020
    %1171 = vmatpush.bf16.msra.mxu0 %v1012
    %1172 = vmatpush.bf16.msra.mxu0 %v1004
    %1173 = vmatpush.bf16.msra.mxu0 %v996
    %1174 = vmatpush.bf16.msra.mxu0 %v988
    %1175 = vmatpush.bf16.msra.mxu0 %v980
    %1176 = vmatpush.bf16.msra.mxu0 %v972
    %1177 = vmatpush.bf16.msra.mxu0 %v964
    %1178 = vmatmul.bf16.gmra.mxu0 %v700
    %v1179 = vpop.f32.mrf.mxu0
    %v1180 = vadd.f32 0.0, %v1179
    %v1181 = vpop.f32.mrf.mxu0
    %v1182 = vadd.f32 0.0, %v1181
    %1183 = vdwg.mxu0
    %1184 = vmatpush.bf16.msra.mxu0 %v1021
    %1185 = vmatpush.bf16.msra.mxu0 %v1013
    %1186 = vmatpush.bf16.msra.mxu0 %v1005
    %1187 = vmatpush.bf16.msra.mxu0 %v997
    %1188 = vmatpush.bf16.msra.mxu0 %v989
    %1189 = vmatpush.bf16.msra.mxu0 %v981
    %1190 = vmatpush.bf16.msra.mxu0 %v973
    %1191 = vmatpush.bf16.msra.mxu0 %v965
    %1192 = vmatmul.bf16.gmra.mxu0 %v700
    %v1193 = vpop.f32.mrf.mxu0
    %v1194 = vadd.f32 0.0, %v1193
    %v1195 = vpop.f32.mrf.mxu0
    %v1196 = vadd.f32 0.0, %v1195
    %1197 = vdwg.mxu0
    %v1198 = vpack.c.bf16 %v1096, %v1096
    %v1199 = vpack.c.bf16 %v1098, %v1098
    %1200 = vst [vmem:[#allocation2] sm:$0xf] %v1198
    %1201 = vst [vmem:[#allocation2 + $0x4] sm:$0xf] %v1199
    %v1202 = vpack.c.bf16 %v1110, %v1110
    %v1203 = vpack.c.bf16 %v1112, %v1112
    %1204 = vst [vmem:[#allocation2 + $0x8] sm:$0xf] %v1202
    %1205 = vst [vmem:[#allocation2 + $0xc] sm:$0xf] %v1203
    %v1206 = vpack.c.bf16 %v1124, %v1124
    %v1207 = vpack.c.bf16 %v1126, %v1126
    %1208 = vst [vmem:[#allocation2 + $0x10] sm:$0xf] %v1206
    %1209 = vst [vmem:[#allocation2 + $0x14] sm:$0xf] %v1207
    %v1210 = vpack.c.bf16 %v1138, %v1138
    %v1211 = vpack.c.bf16 %v1140, %v1140
    %1212 = vst [vmem:[#allocation2 + $0x18] sm:$0xf] %v1210
    %1213 = vst [vmem:[#allocation2 + $0x1c] sm:$0xf] %v1211
    %v1214 = vpack.c.bf16 %v1152, %v1152
    %v1215 = vpack.c.bf16 %v1154, %v1154
    %1216 = vst [vmem:[#allocation2 + $0x20] sm:$0xf] %v1214
    %1217 = vst [vmem:[#allocation2 + $0x24] sm:$0xf] %v1215
    %v1218 = vpack.c.bf16 %v1166, %v1166
    %v1219 = vpack.c.bf16 %v1168, %v1168
    %1220 = vst [vmem:[#allocation2 + $0x28] sm:$0xf] %v1218
    %1221 = vst [vmem:[#allocation2 + $0x2c] sm:$0xf] %v1219
    %v1222 = vpack.c.bf16 %v1180, %v1180
    %v1223 = vpack.c.bf16 %v1182, %v1182
    %1224 = vst [vmem:[#allocation2 + $0x30] sm:$0xf] %v1222
    %1225 = vst [vmem:[#allocation2 + $0x34] sm:$0xf] %v1223
    %v1226 = vpack.c.bf16 %v1194, %v1194
    %v1227 = vpack.c.bf16 %v1196, %v1196
    %1228 = vst [vmem:[#allocation2 + $0x38] sm:$0xf] %v1226
    %1229 = vst [vmem:[#allocation2 + $0x3c] sm:$0xf] %v1227
    %v1230 = vld [vmem:[#allocation2] sm:$0xf]
    %v1231 = vld [vmem:[#allocation2 + $0x4] sm:$0xf]
    %v1232 = vld [vmem:[#allocation2 + $0x8] sm:$0xf]
    %v1233 = vld [vmem:[#allocation2 + $0xc] sm:$0xf]
    %v1234 = vld [vmem:[#allocation2 + $0x10] sm:$0xf]
    %v1235 = vld [vmem:[#allocation2 + $0x14] sm:$0xf]
    %v1236 = vld [vmem:[#allocation2 + $0x18] sm:$0xf]
    %v1237 = vld [vmem:[#allocation2 + $0x1c] sm:$0xf]
    %v1238 = vld [vmem:[#allocation2 + $0x20] sm:$0xf]
    %v1239 = vld [vmem:[#allocation2 + $0x24] sm:$0xf]
    %v1240 = vld [vmem:[#allocation2 + $0x28] sm:$0xf]
    %v1241 = vld [vmem:[#allocation2 + $0x2c] sm:$0xf]
    %v1242 = vld [vmem:[#allocation2 + $0x30] sm:$0xf]
    %v1243 = vld [vmem:[#allocation2 + $0x34] sm:$0xf]
    %v1244 = vld [vmem:[#allocation2 + $0x38] sm:$0xf]
    %v1245 = vld [vmem:[#allocation2 + $0x3c] sm:$0xf]
    %v1246 = vld [vmem:[#allocation9 + $0x1] sm:$0x1]
    %v1247 = vperm.slane %v1246, 0
    %v1264 = vunpack.c.l.b16 %v1230
    %v1265 = vunpack.c.l.b16 %v1231
    %v1266 = vunpack.c.l.b16 %v1232
    %v1267 = vunpack.c.l.b16 %v1233
    %v1268 = vunpack.c.l.b16 %v1234
    %v1269 = vunpack.c.l.b16 %v1235
    %v1270 = vunpack.c.l.b16 %v1236
    %v1271 = vunpack.c.l.b16 %v1237
    %v1272 = vunpack.c.l.b16 %v1238
    %v1273 = vunpack.c.l.b16 %v1239
    %v1274 = vunpack.c.l.b16 %v1240
    %v1275 = vunpack.c.l.b16 %v1241
    %v1276 = vunpack.c.l.b16 %v1242
    %v1277 = vunpack.c.l.b16 %v1243
    %v1278 = vunpack.c.l.b16 %v1244
    %v1279 = vunpack.c.l.b16 %v1245
    %v1280 = vpack.c.b16 %v1265, %v1264
    %v1281 = vpack.c.b16 %v1267, %v1266
    %v1282 = vpack.c.b16 %v1269, %v1268
    %v1283 = vpack.c.b16 %v1271, %v1270
    %v1284 = vpack.c.b16 %v1273, %v1272
    %v1285 = vpack.c.b16 %v1275, %v1274
    %v1286 = vpack.c.b16 %v1277, %v1276
    %v1287 = vpack.c.b16 %v1279, %v1278
    %1296 = vmatpush.bf16.msra.mxu0 %v1287
    %1297 = vmatpush.bf16.msra.mxu0 %v1286
    %1298 = vmatpush.bf16.msra.mxu0 %v1285
    %1299 = vmatpush.bf16.msra.mxu0 %v1284
    %1300 = vmatpush.bf16.msra.mxu0 %v1283
    %1301 = vmatpush.bf16.msra.mxu0 %v1282
    %1302 = vmatpush.bf16.msra.mxu0 %v1281
    %1303 = vmatpush.bf16.msra.mxu0 %v1280
    %1304 = vmatmul.bf16.gmra.mxu0 %v634
    %v1305 = vpop.f32.mrf.mxu0
    %v1306 = vadd.f32 %v1247, %v1305
    %v1307 = vpop.f32.mrf.mxu0
    %v1308 = vadd.f32 %v1247, %v1307
    %1309 = vdwg.mxu0
    %v1310 = vmax.f32 %v1306, 0.0
    %v1311 = vmax.f32 %v1308, 0.0
    %v1312 = vpack.c.bf16 %v1311, %v1310
    %s1313 = scalar_lea.vmem [#allocation8], 1024
    %v1314 = vld [vmem:[%s1313] sm:$0xff]
    %v1315 = vld [vmem:[%s1313 + $0x8] sm:$0xff]
    %v1316 = vld [vmem:[%s1313 + $0x10] sm:$0xff]
    %v1317 = vld [vmem:[%s1313 + $0x18] sm:$0xff]
    %v1318 = vld [vmem:[%s1313 + $0x20] sm:$0xff]
    %v1319 = vld [vmem:[%s1313 + $0x28] sm:$0xff]
    %v1320 = vld [vmem:[%s1313 + $0x30] sm:$0xff]
    %v1321 = vld [vmem:[%s1313 + $0x38] sm:$0xff]
    %v1322 = vld [vmem:[%s1313 + $0x40] sm:$0xff]
    %v1323 = vld [vmem:[%s1313 + $0x48] sm:$0xff]
    %v1324 = vld [vmem:[%s1313 + $0x50] sm:$0xff]
    %v1325 = vld [vmem:[%s1313 + $0x58] sm:$0xff]
    %v1326 = vld [vmem:[%s1313 + $0x60] sm:$0xff]
    %v1327 = vld [vmem:[%s1313 + $0x68] sm:$0xff]
    %v1328 = vld [vmem:[%s1313 + $0x70] sm:$0xff]
    %v1329 = vld [vmem:[%s1313 + $0x78] sm:$0xff]
    %v1330 = vld [vmem:[%s1313 + $0x80] sm:$0xff]
    %v1331 = vld [vmem:[%s1313 + $0x88] sm:$0xff]
    %v1332 = vld [vmem:[%s1313 + $0x90] sm:$0xff]
    %v1333 = vld [vmem:[%s1313 + $0x98] sm:$0xff]
    %v1334 = vld [vmem:[%s1313 + $0xa0] sm:$0xff]
    %v1335 = vld [vmem:[%s1313 + $0xa8] sm:$0xff]
    %v1336 = vld [vmem:[%s1313 + $0xb0] sm:$0xff]
    %v1337 = vld [vmem:[%s1313 + $0xb8] sm:$0xff]
    %v1338 = vld [vmem:[%s1313 + $0xc0] sm:$0xff]
    %v1339 = vld [vmem:[%s1313 + $0xc8] sm:$0xff]
    %v1340 = vld [vmem:[%s1313 + $0xd0] sm:$0xff]
    %v1341 = vld [vmem:[%s1313 + $0xd8] sm:$0xff]
    %v1342 = vld [vmem:[%s1313 + $0xe0] sm:$0xff]
    %v1343 = vld [vmem:[%s1313 + $0xe8] sm:$0xff]
    %v1344 = vld [vmem:[%s1313 + $0xf0] sm:$0xff]
    %v1345 = vld [vmem:[%s1313 + $0xf8] sm:$0xff]
    %v1346 = vld [vmem:[%s1313 + $0x100] sm:$0xff]
    %v1347 = vld [vmem:[%s1313 + $0x108] sm:$0xff]
    %v1348 = vld [vmem:[%s1313 + $0x110] sm:$0xff]
    %v1349 = vld [vmem:[%s1313 + $0x118] sm:$0xff]
    %v1350 = vld [vmem:[%s1313 + $0x120] sm:$0xff]
    %v1351 = vld [vmem:[%s1313 + $0x128] sm:$0xff]
    %v1352 = vld [vmem:[%s1313 + $0x130] sm:$0xff]
    %v1353 = vld [vmem:[%s1313 + $0x138] sm:$0xff]
    %v1354 = vld [vmem:[%s1313 + $0x140] sm:$0xff]
    %v1355 = vld [vmem:[%s1313 + $0x148] sm:$0xff]
    %v1356 = vld [vmem:[%s1313 + $0x150] sm:$0xff]
    %v1357 = vld [vmem:[%s1313 + $0x158] sm:$0xff]
    %v1358 = vld [vmem:[%s1313 + $0x160] sm:$0xff]
    %v1359 = vld [vmem:[%s1313 + $0x168] sm:$0xff]
    %v1360 = vld [vmem:[%s1313 + $0x170] sm:$0xff]
    %v1361 = vld [vmem:[%s1313 + $0x178] sm:$0xff]
    %v1362 = vld [vmem:[%s1313 + $0x180] sm:$0xff]
    %v1363 = vld [vmem:[%s1313 + $0x188] sm:$0xff]
    %v1364 = vld [vmem:[%s1313 + $0x190] sm:$0xff]
    %v1365 = vld [vmem:[%s1313 + $0x198] sm:$0xff]
    %v1366 = vld [vmem:[%s1313 + $0x1a0] sm:$0xff]
    %v1367 = vld [vmem:[%s1313 + $0x1a8] sm:$0xff]
    %v1368 = vld [vmem:[%s1313 + $0x1b0] sm:$0xff]
    %v1369 = vld [vmem:[%s1313 + $0x1b8] sm:$0xff]
    %v1370 = vld [vmem:[%s1313 + $0x1c0] sm:$0xff]
    %v1371 = vld [vmem:[%s1313 + $0x1c8] sm:$0xff]
    %v1372 = vld [vmem:[%s1313 + $0x1d0] sm:$0xff]
    %v1373 = vld [vmem:[%s1313 + $0x1d8] sm:$0xff]
    %v1374 = vld [vmem:[%s1313 + $0x1e0] sm:$0xff]
    %v1375 = vld [vmem:[%s1313 + $0x1e8] sm:$0xff]
    %v1376 = vld [vmem:[%s1313 + $0x1f0] sm:$0xff]
    %v1377 = vld [vmem:[%s1313 + $0x1f8] sm:$0xff]
    %v1442 = vunpack.c.l.b16 %v1314
    %v1443 = vunpack.c.h.b16 %v1314
    %v1444 = vunpack.c.l.b16 %v1315
    %v1445 = vunpack.c.h.b16 %v1315
    %v1446 = vunpack.c.l.b16 %v1316
    %v1447 = vunpack.c.h.b16 %v1316
    %v1448 = vunpack.c.l.b16 %v1317
    %v1449 = vunpack.c.h.b16 %v1317
    %v1450 = vunpack.c.l.b16 %v1318
    %v1451 = vunpack.c.h.b16 %v1318
    %v1452 = vunpack.c.l.b16 %v1319
    %v1453 = vunpack.c.h.b16 %v1319
    %v1454 = vunpack.c.l.b16 %v1320
    %v1455 = vunpack.c.h.b16 %v1320
    %v1456 = vunpack.c.l.b16 %v1321
    %v1457 = vunpack.c.h.b16 %v1321
    %v1458 = vunpack.c.l.b16 %v1322
    %v1459 = vunpack.c.h.b16 %v1322
    %v1460 = vunpack.c.l.b16 %v1323
    %v1461 = vunpack.c.h.b16 %v1323
    %v1462 = vunpack.c.l.b16 %v1324
    %v1463 = vunpack.c.h.b16 %v1324
    %v1464 = vunpack.c.l.b16 %v1325
    %v1465 = vunpack.c.h.b16 %v1325
    %v1466 = vunpack.c.l.b16 %v1326
    %v1467 = vunpack.c.h.b16 %v1326
    %v1468 = vunpack.c.l.b16 %v1327
    %v1469 = vunpack.c.h.b16 %v1327
    %v1470 = vunpack.c.l.b16 %v1328
    %v1471 = vunpack.c.h.b16 %v1328
    %v1472 = vunpack.c.l.b16 %v1329
    %v1473 = vunpack.c.h.b16 %v1329
    %v1474 = vunpack.c.l.b16 %v1330
    %v1475 = vunpack.c.h.b16 %v1330
    %v1476 = vunpack.c.l.b16 %v1331
    %v1477 = vunpack.c.h.b16 %v1331
    %v1478 = vunpack.c.l.b16 %v1332
    %v1479 = vunpack.c.h.b16 %v1332
    %v1480 = vunpack.c.l.b16 %v1333
    %v1481 = vunpack.c.h.b16 %v1333
    %v1482 = vunpack.c.l.b16 %v1334
    %v1483 = vunpack.c.h.b16 %v1334
    %v1484 = vunpack.c.l.b16 %v1335
    %v1485 = vunpack.c.h.b16 %v1335
    %v1486 = vunpack.c.l.b16 %v1336
    %v1487 = vunpack.c.h.b16 %v1336
    %v1488 = vunpack.c.l.b16 %v1337
    %v1489 = vunpack.c.h.b16 %v1337
    %v1490 = vunpack.c.l.b16 %v1338
    %v1491 = vunpack.c.h.b16 %v1338
    %v1492 = vunpack.c.l.b16 %v1339
    %v1493 = vunpack.c.h.b16 %v1339
    %v1494 = vunpack.c.l.b16 %v1340
    %v1495 = vunpack.c.h.b16 %v1340
    %v1496 = vunpack.c.l.b16 %v1341
    %v1497 = vunpack.c.h.b16 %v1341
    %v1498 = vunpack.c.l.b16 %v1342
    %v1499 = vunpack.c.h.b16 %v1342
    %v1500 = vunpack.c.l.b16 %v1343
    %v1501 = vunpack.c.h.b16 %v1343
    %v1502 = vunpack.c.l.b16 %v1344
    %v1503 = vunpack.c.h.b16 %v1344
    %v1504 = vunpack.c.l.b16 %v1345
    %v1505 = vunpack.c.h.b16 %v1345
    %v1506 = vunpack.c.l.b16 %v1346
    %v1507 = vunpack.c.h.b16 %v1346
    %v1508 = vunpack.c.l.b16 %v1347
    %v1509 = vunpack.c.h.b16 %v1347
    %v1510 = vunpack.c.l.b16 %v1348
    %v1511 = vunpack.c.h.b16 %v1348
    %v1512 = vunpack.c.l.b16 %v1349
    %v1513 = vunpack.c.h.b16 %v1349
    %v1514 = vunpack.c.l.b16 %v1350
    %v1515 = vunpack.c.h.b16 %v1350
    %v1516 = vunpack.c.l.b16 %v1351
    %v1517 = vunpack.c.h.b16 %v1351
    %v1518 = vunpack.c.l.b16 %v1352
    %v1519 = vunpack.c.h.b16 %v1352
    %v1520 = vunpack.c.l.b16 %v1353
    %v1521 = vunpack.c.h.b16 %v1353
    %v1522 = vunpack.c.l.b16 %v1354
    %v1523 = vunpack.c.h.b16 %v1354
    %v1524 = vunpack.c.l.b16 %v1355
    %v1525 = vunpack.c.h.b16 %v1355
    %v1526 = vunpack.c.l.b16 %v1356
    %v1527 = vunpack.c.h.b16 %v1356
    %v1528 = vunpack.c.l.b16 %v1357
    %v1529 = vunpack.c.h.b16 %v1357
    %v1530 = vunpack.c.l.b16 %v1358
    %v1531 = vunpack.c.h.b16 %v1358
    %v1532 = vunpack.c.l.b16 %v1359
    %v1533 = vunpack.c.h.b16 %v1359
    %v1534 = vunpack.c.l.b16 %v1360
    %v1535 = vunpack.c.h.b16 %v1360
    %v1536 = vunpack.c.l.b16 %v1361
    %v1537 = vunpack.c.h.b16 %v1361
    %v1538 = vunpack.c.l.b16 %v1362
    %v1539 = vunpack.c.h.b16 %v1362
    %v1540 = vunpack.c.l.b16 %v1363
    %v1541 = vunpack.c.h.b16 %v1363
    %v1542 = vunpack.c.l.b16 %v1364
    %v1543 = vunpack.c.h.b16 %v1364
    %v1544 = vunpack.c.l.b16 %v1365
    %v1545 = vunpack.c.h.b16 %v1365
    %v1546 = vunpack.c.l.b16 %v1366
    %v1547 = vunpack.c.h.b16 %v1366
    %v1548 = vunpack.c.l.b16 %v1367
    %v1549 = vunpack.c.h.b16 %v1367
    %v1550 = vunpack.c.l.b16 %v1368
    %v1551 = vunpack.c.h.b16 %v1368
    %v1552 = vunpack.c.l.b16 %v1369
    %v1553 = vunpack.c.h.b16 %v1369
    %v1554 = vunpack.c.l.b16 %v1370
    %v1555 = vunpack.c.h.b16 %v1370
    %v1556 = vunpack.c.l.b16 %v1371
    %v1557 = vunpack.c.h.b16 %v1371
    %v1558 = vunpack.c.l.b16 %v1372
    %v1559 = vunpack.c.h.b16 %v1372
    %v1560 = vunpack.c.l.b16 %v1373
    %v1561 = vunpack.c.h.b16 %v1373
    %v1562 = vunpack.c.l.b16 %v1374
    %v1563 = vunpack.c.h.b16 %v1374
    %v1564 = vunpack.c.l.b16 %v1375
    %v1565 = vunpack.c.h.b16 %v1375
    %v1566 = vunpack.c.l.b16 %v1376
    %v1567 = vunpack.c.h.b16 %v1376
    %v1568 = vunpack.c.l.b16 %v1377
    %v1569 = vunpack.c.h.b16 %v1377
    %v1570 = vpack.c.b16 %v1450, %v1442
    %v1571 = vpack.c.b16 %v1451, %v1443
    %v1572 = vpack.c.b16 %v1452, %v1444
    %v1573 = vpack.c.b16 %v1453, %v1445
    %v1574 = vpack.c.b16 %v1454, %v1446
    %v1575 = vpack.c.b16 %v1455, %v1447
    %v1576 = vpack.c.b16 %v1456, %v1448
    %v1577 = vpack.c.b16 %v1457, %v1449
    %v1578 = vpack.c.b16 %v1466, %v1458
    %v1579 = vpack.c.b16 %v1467, %v1459
    %v1580 = vpack.c.b16 %v1468, %v1460
    %v1581 = vpack.c.b16 %v1469, %v1461
    %v1582 = vpack.c.b16 %v1470, %v1462
    %v1583 = vpack.c.b16 %v1471, %v1463
    %v1584 = vpack.c.b16 %v1472, %v1464
    %v1585 = vpack.c.b16 %v1473, %v1465
    %v1586 = vpack.c.b16 %v1482, %v1474
    %v1587 = vpack.c.b16 %v1483, %v1475
    %v1588 = vpack.c.b16 %v1484, %v1476
    %v1589 = vpack.c.b16 %v1485, %v1477
    %v1590 = vpack.c.b16 %v1486, %v1478
    %v1591 = vpack.c.b16 %v1487, %v1479
    %v1592 = vpack.c.b16 %v1488, %v1480
    %v1593 = vpack.c.b16 %v1489, %v1481
    %v1594 = vpack.c.b16 %v1498, %v1490
    %v1595 = vpack.c.b16 %v1499, %v1491
    %v1596 = vpack.c.b16 %v1500, %v1492
    %v1597 = vpack.c.b16 %v1501, %v1493
    %v1598 = vpack.c.b16 %v1502, %v1494
    %v1599 = vpack.c.b16 %v1503, %v1495
    %v1600 = vpack.c.b16 %v1504, %v1496
    %v1601 = vpack.c.b16 %v1505, %v1497
    %v1602 = vpack.c.b16 %v1514, %v1506
    %v1603 = vpack.c.b16 %v1515, %v1507
    %v1604 = vpack.c.b16 %v1516, %v1508
    %v1605 = vpack.c.b16 %v1517, %v1509
    %v1606 = vpack.c.b16 %v1518, %v1510
    %v1607 = vpack.c.b16 %v1519, %v1511
    %v1608 = vpack.c.b16 %v1520, %v1512
    %v1609 = vpack.c.b16 %v1521, %v1513
    %v1610 = vpack.c.b16 %v1530, %v1522
    %v1611 = vpack.c.b16 %v1531, %v1523
    %v1612 = vpack.c.b16 %v1532, %v1524
    %v1613 = vpack.c.b16 %v1533, %v1525
    %v1614 = vpack.c.b16 %v1534, %v1526
    %v1615 = vpack.c.b16 %v1535, %v1527
    %v1616 = vpack.c.b16 %v1536, %v1528
    %v1617 = vpack.c.b16 %v1537, %v1529
    %v1618 = vpack.c.b16 %v1546, %v1538
    %v1619 = vpack.c.b16 %v1547, %v1539
    %v1620 = vpack.c.b16 %v1548, %v1540
    %v1621 = vpack.c.b16 %v1549, %v1541
    %v1622 = vpack.c.b16 %v1550, %v1542
    %v1623 = vpack.c.b16 %v1551, %v1543
    %v1624 = vpack.c.b16 %v1552, %v1544
    %v1625 = vpack.c.b16 %v1553, %v1545
    %v1626 = vpack.c.b16 %v1562, %v1554
    %v1627 = vpack.c.b16 %v1563, %v1555
    %v1628 = vpack.c.b16 %v1564, %v1556
    %v1629 = vpack.c.b16 %v1565, %v1557
    %v1630 = vpack.c.b16 %v1566, %v1558
    %v1631 = vpack.c.b16 %v1567, %v1559
    %v1632 = vpack.c.b16 %v1568, %v1560
    %v1633 = vpack.c.b16 %v1569, %v1561
    %1698 = vmatpush.bf16.msra.mxu0 %v1626
    %1699 = vmatpush.bf16.msra.mxu0 %v1618
    %1700 = vmatpush.bf16.msra.mxu0 %v1610
    %1701 = vmatpush.bf16.msra.mxu0 %v1602
    %1702 = vmatpush.bf16.msra.mxu0 %v1594
    %1703 = vmatpush.bf16.msra.mxu0 %v1586
    %1704 = vmatpush.bf16.msra.mxu0 %v1578
    %1705 = vmatpush.bf16.msra.mxu0 %v1570
    %1706 = vmatmul.bf16.gmra.mxu0 %v1312
    %v1707 = vpop.f32.mrf.mxu0
    %v1708 = vadd.f32 0.0, %v1707
    %v1709 = vpop.f32.mrf.mxu0
    %v1710 = vadd.f32 0.0, %v1709
    %1711 = vdwg.mxu0
    %1712 = vmatpush.bf16.msra.mxu0 %v1627
    %1713 = vmatpush.bf16.msra.mxu0 %v1619
    %1714 = vmatpush.bf16.msra.mxu0 %v1611
    %1715 = vmatpush.bf16.msra.mxu0 %v1603
    %1716 = vmatpush.bf16.msra.mxu0 %v1595
    %1717 = vmatpush.bf16.msra.mxu0 %v1587
    %1718 = vmatpush.bf16.msra.mxu0 %v1579
    %1719 = vmatpush.bf16.msra.mxu0 %v1571
    %1720 = vmatmul.bf16.gmra.mxu0 %v1312
    %v1721 = vpop.f32.mrf.mxu0
    %v1722 = vadd.f32 0.0, %v1721
    %v1723 = vpop.f32.mrf.mxu0
    %v1724 = vadd.f32 0.0, %v1723
    %1725 = vdwg.mxu0
    %1726 = vmatpush.bf16.msra.mxu0 %v1628
    %1727 = vmatpush.bf16.msra.mxu0 %v1620
    %1728 = vmatpush.bf16.msra.mxu0 %v1612
    %1729 = vmatpush.bf16.msra.mxu0 %v1604
    %1730 = vmatpush.bf16.msra.mxu0 %v1596
    %1731 = vmatpush.bf16.msra.mxu0 %v1588
    %1732 = vmatpush.bf16.msra.mxu0 %v1580
    %1733 = vmatpush.bf16.msra.mxu0 %v1572
    %1734 = vmatmul.bf16.gmra.mxu0 %v1312
    %v1735 = vpop.f32.mrf.mxu0
    %v1736 = vadd.f32 0.0, %v1735
    %v1737 = vpop.f32.mrf.mxu0
    %v1738 = vadd.f32 0.0, %v1737
    %1739 = vdwg.mxu0
    %1740 = vmatpush.bf16.msra.mxu0 %v1629
    %1741 = vmatpush.bf16.msra.mxu0 %v1621
    %1742 = vmatpush.bf16.msra.mxu0 %v1613
    %1743 = vmatpush.bf16.msra.mxu0 %v1605
    %1744 = vmatpush.bf16.msra.mxu0 %v1597
    %1745 = vmatpush.bf16.msra.mxu0 %v1589
    %1746 = vmatpush.bf16.msra.mxu0 %v1581
    %1747 = vmatpush.bf16.msra.mxu0 %v1573
    %1748 = vmatmul.bf16.gmra.mxu0 %v1312
    %v1749 = vpop.f32.mrf.mxu0
    %v1750 = vadd.f32 0.0, %v1749
    %v1751 = vpop.f32.mrf.mxu0
    %v1752 = vadd.f32 0.0, %v1751
    %1753 = vdwg.mxu0
    %1754 = vmatpush.bf16.msra.mxu0 %v1630
    %1755 = vmatpush.bf16.msra.mxu0 %v1622
    %1756 = vmatpush.bf16.msra.mxu0 %v1614
    %1757 = vmatpush.bf16.msra.mxu0 %v1606
    %1758 = vmatpush.bf16.msra.mxu0 %v1598
    %1759 = vmatpush.bf16.msra.mxu0 %v1590
    %1760 = vmatpush.bf16.msra.mxu0 %v1582
    %1761 = vmatpush.bf16.msra.mxu0 %v1574
    %1762 = vmatmul.bf16.gmra.mxu0 %v1312
    %v1763 = vpop.f32.mrf.mxu0
    %v1764 = vadd.f32 0.0, %v1763
    %v1765 = vpop.f32.mrf.mxu0
    %v1766 = vadd.f32 0.0, %v1765
    %1767 = vdwg.mxu0
    %1768 = vmatpush.bf16.msra.mxu0 %v1631
    %1769 = vmatpush.bf16.msra.mxu0 %v1623
    %1770 = vmatpush.bf16.msra.mxu0 %v1615
    %1771 = vmatpush.bf16.msra.mxu0 %v1607
    %1772 = vmatpush.bf16.msra.mxu0 %v1599
    %1773 = vmatpush.bf16.msra.mxu0 %v1591
    %1774 = vmatpush.bf16.msra.mxu0 %v1583
    %1775 = vmatpush.bf16.msra.mxu0 %v1575
    %1776 = vmatmul.bf16.gmra.mxu0 %v1312
    %v1777 = vpop.f32.mrf.mxu0
    %v1778 = vadd.f32 0.0, %v1777
    %v1779 = vpop.f32.mrf.mxu0
    %v1780 = vadd.f32 0.0, %v1779
    %1781 = vdwg.mxu0
    %1782 = vmatpush.bf16.msra.mxu0 %v1632
    %1783 = vmatpush.bf16.msra.mxu0 %v1624
    %1784 = vmatpush.bf16.msra.mxu0 %v1616
    %1785 = vmatpush.bf16.msra.mxu0 %v1608
    %1786 = vmatpush.bf16.msra.mxu0 %v1600
    %1787 = vmatpush.bf16.msra.mxu0 %v1592
    %1788 = vmatpush.bf16.msra.mxu0 %v1584
    %1789 = vmatpush.bf16.msra.mxu0 %v1576
    %1790 = vmatmul.bf16.gmra.mxu0 %v1312
    %v1791 = vpop.f32.mrf.mxu0
    %v1792 = vadd.f32 0.0, %v1791
    %v1793 = vpop.f32.mrf.mxu0
    %v1794 = vadd.f32 0.0, %v1793
    %1795 = vdwg.mxu0
    %1796 = vmatpush.bf16.msra.mxu0 %v1633
    %1797 = vmatpush.bf16.msra.mxu0 %v1625
    %1798 = vmatpush.bf16.msra.mxu0 %v1617
    %1799 = vmatpush.bf16.msra.mxu0 %v1609
    %1800 = vmatpush.bf16.msra.mxu0 %v1601
    %1801 = vmatpush.bf16.msra.mxu0 %v1593
    %1802 = vmatpush.bf16.msra.mxu0 %v1585
    %1803 = vmatpush.bf16.msra.mxu0 %v1577
    %1804 = vmatmul.bf16.gmra.mxu0 %v1312
    %v1805 = vpop.f32.mrf.mxu0
    %v1806 = vadd.f32 0.0, %v1805
    %v1807 = vpop.f32.mrf.mxu0
    %v1808 = vadd.f32 0.0, %v1807
    %1809 = vdwg.mxu0
    %v1810 = vpack.c.bf16 %v1708, %v1708
    %v1811 = vpack.c.bf16 %v1710, %v1710
    %1812 = vst [vmem:[#allocation2] sm:$0xf] %v1810
    %1813 = vst [vmem:[#allocation2 + $0x4] sm:$0xf] %v1811
    %v1814 = vpack.c.bf16 %v1722, %v1722
    %v1815 = vpack.c.bf16 %v1724, %v1724
    %1816 = vst [vmem:[#allocation2 + $0x8] sm:$0xf] %v1814
    %1817 = vst [vmem:[#allocation2 + $0xc] sm:$0xf] %v1815
    %v1818 = vpack.c.bf16 %v1736, %v1736
    %v1819 = vpack.c.bf16 %v1738, %v1738
    %1820 = vst [vmem:[#allocation2 + $0x10] sm:$0xf] %v1818
    %1821 = vst [vmem:[#allocation2 + $0x14] sm:$0xf] %v1819
    %v1822 = vpack.c.bf16 %v1750, %v1750
    %v1823 = vpack.c.bf16 %v1752, %v1752
    %1824 = vst [vmem:[#allocation2 + $0x18] sm:$0xf] %v1822
    %1825 = vst [vmem:[#allocation2 + $0x1c] sm:$0xf] %v1823
    %v1826 = vpack.c.bf16 %v1764, %v1764
    %v1827 = vpack.c.bf16 %v1766, %v1766
    %1828 = vst [vmem:[#allocation2 + $0x20] sm:$0xf] %v1826
    %1829 = vst [vmem:[#allocation2 + $0x24] sm:$0xf] %v1827
    %v1830 = vpack.c.bf16 %v1778, %v1778
    %v1831 = vpack.c.bf16 %v1780, %v1780
    %1832 = vst [vmem:[#allocation2 + $0x28] sm:$0xf] %v1830
    %1833 = vst [vmem:[#allocation2 + $0x2c] sm:$0xf] %v1831
    %v1834 = vpack.c.bf16 %v1792, %v1792
    %v1835 = vpack.c.bf16 %v1794, %v1794
    %1836 = vst [vmem:[#allocation2 + $0x30] sm:$0xf] %v1834
    %1837 = vst [vmem:[#allocation2 + $0x34] sm:$0xf] %v1835
    %v1838 = vpack.c.bf16 %v1806, %v1806
    %v1839 = vpack.c.bf16 %v1808, %v1808
    %1840 = vst [vmem:[#allocation2 + $0x38] sm:$0xf] %v1838
    %1841 = vst [vmem:[#allocation2 + $0x3c] sm:$0xf] %v1839
    %v1842 = vld [vmem:[#allocation2] sm:$0xf]
    %v1843 = vld [vmem:[#allocation2 + $0x4] sm:$0xf]
    %v1844 = vld [vmem:[#allocation2 + $0x8] sm:$0xf]
    %v1845 = vld [vmem:[#allocation2 + $0xc] sm:$0xf]
    %v1846 = vld [vmem:[#allocation2 + $0x10] sm:$0xf]
    %v1847 = vld [vmem:[#allocation2 + $0x14] sm:$0xf]
    %v1848 = vld [vmem:[#allocation2 + $0x18] sm:$0xf]
    %v1849 = vld [vmem:[#allocation2 + $0x1c] sm:$0xf]
    %v1850 = vld [vmem:[#allocation2 + $0x20] sm:$0xf]
    %v1851 = vld [vmem:[#allocation2 + $0x24] sm:$0xf]
    %v1852 = vld [vmem:[#allocation2 + $0x28] sm:$0xf]
    %v1853 = vld [vmem:[#allocation2 + $0x2c] sm:$0xf]
    %v1854 = vld [vmem:[#allocation2 + $0x30] sm:$0xf]
    %v1855 = vld [vmem:[#allocation2 + $0x34] sm:$0xf]
    %v1856 = vld [vmem:[#allocation2 + $0x38] sm:$0xf]
    %v1857 = vld [vmem:[#allocation2 + $0x3c] sm:$0xf]
    %v1858 = vld [vmem:[#allocation9 + $0x2] sm:$0x1]
    %v1859 = vperm.slane %v1858, 0
    %v1876 = vunpack.c.l.b16 %v1842
    %v1877 = vunpack.c.l.b16 %v1843
    %v1878 = vunpack.c.l.b16 %v1844
    %v1879 = vunpack.c.l.b16 %v1845
    %v1880 = vunpack.c.l.b16 %v1846
    %v1881 = vunpack.c.l.b16 %v1847
    %v1882 = vunpack.c.l.b16 %v1848
    %v1883 = vunpack.c.l.b16 %v1849
    %v1884 = vunpack.c.l.b16 %v1850
    %v1885 = vunpack.c.l.b16 %v1851
    %v1886 = vunpack.c.l.b16 %v1852
    %v1887 = vunpack.c.l.b16 %v1853
    %v1888 = vunpack.c.l.b16 %v1854
    %v1889 = vunpack.c.l.b16 %v1855
    %v1890 = vunpack.c.l.b16 %v1856
    %v1891 = vunpack.c.l.b16 %v1857
    %v1892 = vpack.c.b16 %v1877, %v1876
    %v1893 = vpack.c.b16 %v1879, %v1878
    %v1894 = vpack.c.b16 %v1881, %v1880
    %v1895 = vpack.c.b16 %v1883, %v1882
    %v1896 = vpack.c.b16 %v1885, %v1884
    %v1897 = vpack.c.b16 %v1887, %v1886
    %v1898 = vpack.c.b16 %v1889, %v1888
    %v1899 = vpack.c.b16 %v1891, %v1890
    %1908 = vmatpush.bf16.msra.mxu0 %v1899
    %1909 = vmatpush.bf16.msra.mxu0 %v1898
    %1910 = vmatpush.bf16.msra.mxu0 %v1897
    %1911 = vmatpush.bf16.msra.mxu0 %v1896
    %1912 = vmatpush.bf16.msra.mxu0 %v1895
    %1913 = vmatpush.bf16.msra.mxu0 %v1894
    %1914 = vmatpush.bf16.msra.mxu0 %v1893
    %1915 = vmatpush.bf16.msra.mxu0 %v1892
    %1916 = vmatmul.bf16.gmra.mxu0 %v634
    %v1917 = vpop.f32.mrf.mxu0
    %v1918 = vadd.f32 %v1859, %v1917
    %v1919 = vpop.f32.mrf.mxu0
    %v1920 = vadd.f32 %v1859, %v1919
    %1921 = vdwg.mxu0
    %v1922 = vmax.f32 %v1918, 0.0
    %v1923 = vmax.f32 %v1920, 0.0
    %v1924 = vpack.c.bf16 %v1923, %v1922
    %s1925 = scalar_lea.vmem [#allocation8], 1536
    %v1926 = vld [vmem:[%s1925] sm:$0xff]
    %v1927 = vld [vmem:[%s1925 + $0x8] sm:$0xff]
    %v1928 = vld [vmem:[%s1925 + $0x10] sm:$0xff]
    %v1929 = vld [vmem:[%s1925 + $0x18] sm:$0xff]
    %v1930 = vld [vmem:[%s1925 + $0x20] sm:$0xff]
    %v1931 = vld [vmem:[%s1925 + $0x28] sm:$0xff]
    %v1932 = vld [vmem:[%s1925 + $0x30] sm:$0xff]
    %v1933 = vld [vmem:[%s1925 + $0x38] sm:$0xff]
    %v1934 = vld [vmem:[%s1925 + $0x40] sm:$0xff]
    %v1935 = vld [vmem:[%s1925 + $0x48] sm:$0xff]
    %v1936 = vld [vmem:[%s1925 + $0x50] sm:$0xff]
    %v1937 = vld [vmem:[%s1925 + $0x58] sm:$0xff]
    %v1938 = vld [vmem:[%s1925 + $0x60] sm:$0xff]
    %v1939 = vld [vmem:[%s1925 + $0x68] sm:$0xff]
    %v1940 = vld [vmem:[%s1925 + $0x70] sm:$0xff]
    %v1941 = vld [vmem:[%s1925 + $0x78] sm:$0xff]
    %v1942 = vld [vmem:[%s1925 + $0x80] sm:$0xff]
    %v1943 = vld [vmem:[%s1925 + $0x88] sm:$0xff]
    %v1944 = vld [vmem:[%s1925 + $0x90] sm:$0xff]
    %v1945 = vld [vmem:[%s1925 + $0x98] sm:$0xff]
    %v1946 = vld [vmem:[%s1925 + $0xa0] sm:$0xff]
    %v1947 = vld [vmem:[%s1925 + $0xa8] sm:$0xff]
    %v1948 = vld [vmem:[%s1925 + $0xb0] sm:$0xff]
    %v1949 = vld [vmem:[%s1925 + $0xb8] sm:$0xff]
    %v1950 = vld [vmem:[%s1925 + $0xc0] sm:$0xff]
    %v1951 = vld [vmem:[%s1925 + $0xc8] sm:$0xff]
    %v1952 = vld [vmem:[%s1925 + $0xd0] sm:$0xff]
    %v1953 = vld [vmem:[%s1925 + $0xd8] sm:$0xff]
    %v1954 = vld [vmem:[%s1925 + $0xe0] sm:$0xff]
    %v1955 = vld [vmem:[%s1925 + $0xe8] sm:$0xff]
    %v1956 = vld [vmem:[%s1925 + $0xf0] sm:$0xff]
    %v1957 = vld [vmem:[%s1925 + $0xf8] sm:$0xff]
    %v1958 = vld [vmem:[%s1925 + $0x100] sm:$0xff]
    %v1959 = vld [vmem:[%s1925 + $0x108] sm:$0xff]
    %v1960 = vld [vmem:[%s1925 + $0x110] sm:$0xff]
    %v1961 = vld [vmem:[%s1925 + $0x118] sm:$0xff]
    %v1962 = vld [vmem:[%s1925 + $0x120] sm:$0xff]
    %v1963 = vld [vmem:[%s1925 + $0x128] sm:$0xff]
    %v1964 = vld [vmem:[%s1925 + $0x130] sm:$0xff]
    %v1965 = vld [vmem:[%s1925 + $0x138] sm:$0xff]
    %v1966 = vld [vmem:[%s1925 + $0x140] sm:$0xff]
    %v1967 = vld [vmem:[%s1925 + $0x148] sm:$0xff]
    %v1968 = vld [vmem:[%s1925 + $0x150] sm:$0xff]
    %v1969 = vld [vmem:[%s1925 + $0x158] sm:$0xff]
    %v1970 = vld [vmem:[%s1925 + $0x160] sm:$0xff]
    %v1971 = vld [vmem:[%s1925 + $0x168] sm:$0xff]
    %v1972 = vld [vmem:[%s1925 + $0x170] sm:$0xff]
    %v1973 = vld [vmem:[%s1925 + $0x178] sm:$0xff]
    %v1974 = vld [vmem:[%s1925 + $0x180] sm:$0xff]
    %v1975 = vld [vmem:[%s1925 + $0x188] sm:$0xff]
    %v1976 = vld [vmem:[%s1925 + $0x190] sm:$0xff]
    %v1977 = vld [vmem:[%s1925 + $0x198] sm:$0xff]
    %v1978 = vld [vmem:[%s1925 + $0x1a0] sm:$0xff]
    %v1979 = vld [vmem:[%s1925 + $0x1a8] sm:$0xff]
    %v1980 = vld [vmem:[%s1925 + $0x1b0] sm:$0xff]
    %v1981 = vld [vmem:[%s1925 + $0x1b8] sm:$0xff]
    %v1982 = vld [vmem:[%s1925 + $0x1c0] sm:$0xff]
    %v1983 = vld [vmem:[%s1925 + $0x1c8] sm:$0xff]
    %v1984 = vld [vmem:[%s1925 + $0x1d0] sm:$0xff]
    %v1985 = vld [vmem:[%s1925 + $0x1d8] sm:$0xff]
    %v1986 = vld [vmem:[%s1925 + $0x1e0] sm:$0xff]
    %v1987 = vld [vmem:[%s1925 + $0x1e8] sm:$0xff]
    %v1988 = vld [vmem:[%s1925 + $0x1f0] sm:$0xff]
    %v1989 = vld [vmem:[%s1925 + $0x1f8] sm:$0xff]
    %v2054 = vunpack.c.l.b16 %v1926
    %v2055 = vunpack.c.h.b16 %v1926
    %v2056 = vunpack.c.l.b16 %v1927
    %v2057 = vunpack.c.h.b16 %v1927
    %v2058 = vunpack.c.l.b16 %v1928
    %v2059 = vunpack.c.h.b16 %v1928
    %v2060 = vunpack.c.l.b16 %v1929
    %v2061 = vunpack.c.h.b16 %v1929
    %v2062 = vunpack.c.l.b16 %v1930
    %v2063 = vunpack.c.h.b16 %v1930
    %v2064 = vunpack.c.l.b16 %v1931
    %v2065 = vunpack.c.h.b16 %v1931
    %v2066 = vunpack.c.l.b16 %v1932
    %v2067 = vunpack.c.h.b16 %v1932
    %v2068 = vunpack.c.l.b16 %v1933
    %v2069 = vunpack.c.h.b16 %v1933
    %v2070 = vunpack.c.l.b16 %v1934
    %v2071 = vunpack.c.h.b16 %v1934
    %v2072 = vunpack.c.l.b16 %v1935
    %v2073 = vunpack.c.h.b16 %v1935
    %v2074 = vunpack.c.l.b16 %v1936
    %v2075 = vunpack.c.h.b16 %v1936
    %v2076 = vunpack.c.l.b16 %v1937
    %v2077 = vunpack.c.h.b16 %v1937
    %v2078 = vunpack.c.l.b16 %v1938
    %v2079 = vunpack.c.h.b16 %v1938
    %v2080 = vunpack.c.l.b16 %v1939
    %v2081 = vunpack.c.h.b16 %v1939
    %v2082 = vunpack.c.l.b16 %v1940
    %v2083 = vunpack.c.h.b16 %v1940
    %v2084 = vunpack.c.l.b16 %v1941
    %v2085 = vunpack.c.h.b16 %v1941
    %v2086 = vunpack.c.l.b16 %v1942
    %v2087 = vunpack.c.h.b16 %v1942
    %v2088 = vunpack.c.l.b16 %v1943
    %v2089 = vunpack.c.h.b16 %v1943
    %v2090 = vunpack.c.l.b16 %v1944
    %v2091 = vunpack.c.h.b16 %v1944
    %v2092 = vunpack.c.l.b16 %v1945
    %v2093 = vunpack.c.h.b16 %v1945
    %v2094 = vunpack.c.l.b16 %v1946
    %v2095 = vunpack.c.h.b16 %v1946
    %v2096 = vunpack.c.l.b16 %v1947
    %v2097 = vunpack.c.h.b16 %v1947
    %v2098 = vunpack.c.l.b16 %v1948
    %v2099 = vunpack.c.h.b16 %v1948
    %v2100 = vunpack.c.l.b16 %v1949
    %v2101 = vunpack.c.h.b16 %v1949
    %v2102 = vunpack.c.l.b16 %v1950
    %v2103 = vunpack.c.h.b16 %v1950
    %v2104 = vunpack.c.l.b16 %v1951
    %v2105 = vunpack.c.h.b16 %v1951
    %v2106 = vunpack.c.l.b16 %v1952
    %v2107 = vunpack.c.h.b16 %v1952
    %v2108 = vunpack.c.l.b16 %v1953
    %v2109 = vunpack.c.h.b16 %v1953
    %v2110 = vunpack.c.l.b16 %v1954
    %v2111 = vunpack.c.h.b16 %v1954
    %v2112 = vunpack.c.l.b16 %v1955
    %v2113 = vunpack.c.h.b16 %v1955
    %v2114 = vunpack.c.l.b16 %v1956
    %v2115 = vunpack.c.h.b16 %v1956
    %v2116 = vunpack.c.l.b16 %v1957
    %v2117 = vunpack.c.h.b16 %v1957
    %v2118 = vunpack.c.l.b16 %v1958
    %v2119 = vunpack.c.h.b16 %v1958
    %v2120 = vunpack.c.l.b16 %v1959
    %v2121 = vunpack.c.h.b16 %v1959
    %v2122 = vunpack.c.l.b16 %v1960
    %v2123 = vunpack.c.h.b16 %v1960
    %v2124 = vunpack.c.l.b16 %v1961
    %v2125 = vunpack.c.h.b16 %v1961
    %v2126 = vunpack.c.l.b16 %v1962
    %v2127 = vunpack.c.h.b16 %v1962
    %v2128 = vunpack.c.l.b16 %v1963
    %v2129 = vunpack.c.h.b16 %v1963
    %v2130 = vunpack.c.l.b16 %v1964
    %v2131 = vunpack.c.h.b16 %v1964
    %v2132 = vunpack.c.l.b16 %v1965
    %v2133 = vunpack.c.h.b16 %v1965
    %v2134 = vunpack.c.l.b16 %v1966
    %v2135 = vunpack.c.h.b16 %v1966
    %v2136 = vunpack.c.l.b16 %v1967
    %v2137 = vunpack.c.h.b16 %v1967
    %v2138 = vunpack.c.l.b16 %v1968
    %v2139 = vunpack.c.h.b16 %v1968
    %v2140 = vunpack.c.l.b16 %v1969
    %v2141 = vunpack.c.h.b16 %v1969
    %v2142 = vunpack.c.l.b16 %v1970
    %v2143 = vunpack.c.h.b16 %v1970
    %v2144 = vunpack.c.l.b16 %v1971
    %v2145 = vunpack.c.h.b16 %v1971
    %v2146 = vunpack.c.l.b16 %v1972
    %v2147 = vunpack.c.h.b16 %v1972
    %v2148 = vunpack.c.l.b16 %v1973
    %v2149 = vunpack.c.h.b16 %v1973
    %v2150 = vunpack.c.l.b16 %v1974
    %v2151 = vunpack.c.h.b16 %v1974
    %v2152 = vunpack.c.l.b16 %v1975
    %v2153 = vunpack.c.h.b16 %v1975
    %v2154 = vunpack.c.l.b16 %v1976
    %v2155 = vunpack.c.h.b16 %v1976
    %v2156 = vunpack.c.l.b16 %v1977
    %v2157 = vunpack.c.h.b16 %v1977
    %v2158 = vunpack.c.l.b16 %v1978
    %v2159 = vunpack.c.h.b16 %v1978
    %v2160 = vunpack.c.l.b16 %v1979
    %v2161 = vunpack.c.h.b16 %v1979
    %v2162 = vunpack.c.l.b16 %v1980
    %v2163 = vunpack.c.h.b16 %v1980
    %v2164 = vunpack.c.l.b16 %v1981
    %v2165 = vunpack.c.h.b16 %v1981
    %v2166 = vunpack.c.l.b16 %v1982
    %v2167 = vunpack.c.h.b16 %v1982
    %v2168 = vunpack.c.l.b16 %v1983
    %v2169 = vunpack.c.h.b16 %v1983
    %v2170 = vunpack.c.l.b16 %v1984
    %v2171 = vunpack.c.h.b16 %v1984
    %v2172 = vunpack.c.l.b16 %v1985
    %v2173 = vunpack.c.h.b16 %v1985
    %v2174 = vunpack.c.l.b16 %v1986
    %v2175 = vunpack.c.h.b16 %v1986
    %v2176 = vunpack.c.l.b16 %v1987
    %v2177 = vunpack.c.h.b16 %v1987
    %v2178 = vunpack.c.l.b16 %v1988
    %v2179 = vunpack.c.h.b16 %v1988
    %v2180 = vunpack.c.l.b16 %v1989
    %v2181 = vunpack.c.h.b16 %v1989
    %v2182 = vpack.c.b16 %v2062, %v2054
    %v2183 = vpack.c.b16 %v2063, %v2055
    %v2184 = vpack.c.b16 %v2064, %v2056
    %v2185 = vpack.c.b16 %v2065, %v2057
    %v2186 = vpack.c.b16 %v2066, %v2058
    %v2187 = vpack.c.b16 %v2067, %v2059
    %v2188 = vpack.c.b16 %v2068, %v2060
    %v2189 = vpack.c.b16 %v2069, %v2061
    %v2190 = vpack.c.b16 %v2078, %v2070
    %v2191 = vpack.c.b16 %v2079, %v2071
    %v2192 = vpack.c.b16 %v2080, %v2072
    %v2193 = vpack.c.b16 %v2081, %v2073
    %v2194 = vpack.c.b16 %v2082, %v2074
    %v2195 = vpack.c.b16 %v2083, %v2075
    %v2196 = vpack.c.b16 %v2084, %v2076
    %v2197 = vpack.c.b16 %v2085, %v2077
    %v2198 = vpack.c.b16 %v2094, %v2086
    %v2199 = vpack.c.b16 %v2095, %v2087
    %v2200 = vpack.c.b16 %v2096, %v2088
    %v2201 = vpack.c.b16 %v2097, %v2089
    %v2202 = vpack.c.b16 %v2098, %v2090
    %v2203 = vpack.c.b16 %v2099, %v2091
    %v2204 = vpack.c.b16 %v2100, %v2092
    %v2205 = vpack.c.b16 %v2101, %v2093
    %v2206 = vpack.c.b16 %v2110, %v2102
    %v2207 = vpack.c.b16 %v2111, %v2103
    %v2208 = vpack.c.b16 %v2112, %v2104
    %v2209 = vpack.c.b16 %v2113, %v2105
    %v2210 = vpack.c.b16 %v2114, %v2106
    %v2211 = vpack.c.b16 %v2115, %v2107
    %v2212 = vpack.c.b16 %v2116, %v2108
    %v2213 = vpack.c.b16 %v2117, %v2109
    %v2214 = vpack.c.b16 %v2126, %v2118
    %v2215 = vpack.c.b16 %v2127, %v2119
    %v2216 = vpack.c.b16 %v2128, %v2120
    %v2217 = vpack.c.b16 %v2129, %v2121
    %v2218 = vpack.c.b16 %v2130, %v2122
    %v2219 = vpack.c.b16 %v2131, %v2123
    %v2220 = vpack.c.b16 %v2132, %v2124
    %v2221 = vpack.c.b16 %v2133, %v2125
    %v2222 = vpack.c.b16 %v2142, %v2134
    %v2223 = vpack.c.b16 %v2143, %v2135
    %v2224 = vpack.c.b16 %v2144, %v2136
    %v2225 = vpack.c.b16 %v2145, %v2137
    %v2226 = vpack.c.b16 %v2146, %v2138
    %v2227 = vpack.c.b16 %v2147, %v2139
    %v2228 = vpack.c.b16 %v2148, %v2140
    %v2229 = vpack.c.b16 %v2149, %v2141
    %v2230 = vpack.c.b16 %v2158, %v2150
    %v2231 = vpack.c.b16 %v2159, %v2151
    %v2232 = vpack.c.b16 %v2160, %v2152
    %v2233 = vpack.c.b16 %v2161, %v2153
    %v2234 = vpack.c.b16 %v2162, %v2154
    %v2235 = vpack.c.b16 %v2163, %v2155
    %v2236 = vpack.c.b16 %v2164, %v2156
    %v2237 = vpack.c.b16 %v2165, %v2157
    %v2238 = vpack.c.b16 %v2174, %v2166
    %v2239 = vpack.c.b16 %v2175, %v2167
    %v2240 = vpack.c.b16 %v2176, %v2168
    %v2241 = vpack.c.b16 %v2177, %v2169
    %v2242 = vpack.c.b16 %v2178, %v2170
    %v2243 = vpack.c.b16 %v2179, %v2171
    %v2244 = vpack.c.b16 %v2180, %v2172
    %v2245 = vpack.c.b16 %v2181, %v2173
    %2310 = vmatpush.bf16.msra.mxu0 %v2238
    %2311 = vmatpush.bf16.msra.mxu0 %v2230
    %2312 = vmatpush.bf16.msra.mxu0 %v2222
    %2313 = vmatpush.bf16.msra.mxu0 %v2214
    %2314 = vmatpush.bf16.msra.mxu0 %v2206
    %2315 = vmatpush.bf16.msra.mxu0 %v2198
    %2316 = vmatpush.bf16.msra.mxu0 %v2190
    %2317 = vmatpush.bf16.msra.mxu0 %v2182
    %2318 = vmatmul.bf16.gmra.mxu0 %v1924
    %v2319 = vpop.f32.mrf.mxu0
    %v2320 = vadd.f32 0.0, %v2319
    %v2321 = vpop.f32.mrf.mxu0
    %v2322 = vadd.f32 0.0, %v2321
    %2323 = vdwg.mxu0
    %2324 = vmatpush.bf16.msra.mxu0 %v2239
    %2325 = vmatpush.bf16.msra.mxu0 %v2231
    %2326 = vmatpush.bf16.msra.mxu0 %v2223
    %2327 = vmatpush.bf16.msra.mxu0 %v2215
    %2328 = vmatpush.bf16.msra.mxu0 %v2207
    %2329 = vmatpush.bf16.msra.mxu0 %v2199
    %2330 = vmatpush.bf16.msra.mxu0 %v2191
    %2331 = vmatpush.bf16.msra.mxu0 %v2183
    %2332 = vmatmul.bf16.gmra.mxu0 %v1924
    %v2333 = vpop.f32.mrf.mxu0
    %v2334 = vadd.f32 0.0, %v2333
    %v2335 = vpop.f32.mrf.mxu0
    %v2336 = vadd.f32 0.0, %v2335
    %2337 = vdwg.mxu0
    %2338 = vmatpush.bf16.msra.mxu0 %v2240
    %2339 = vmatpush.bf16.msra.mxu0 %v2232
    %2340 = vmatpush.bf16.msra.mxu0 %v2224
    %2341 = vmatpush.bf16.msra.mxu0 %v2216
    %2342 = vmatpush.bf16.msra.mxu0 %v2208
    %2343 = vmatpush.bf16.msra.mxu0 %v2200
    %2344 = vmatpush.bf16.msra.mxu0 %v2192
    %2345 = vmatpush.bf16.msra.mxu0 %v2184
    %2346 = vmatmul.bf16.gmra.mxu0 %v1924
    %v2347 = vpop.f32.mrf.mxu0
    %v2348 = vadd.f32 0.0, %v2347
    %v2349 = vpop.f32.mrf.mxu0
    %v2350 = vadd.f32 0.0, %v2349
    %2351 = vdwg.mxu0
    %2352 = vmatpush.bf16.msra.mxu0 %v2241
    %2353 = vmatpush.bf16.msra.mxu0 %v2233
    %2354 = vmatpush.bf16.msra.mxu0 %v2225
    %2355 = vmatpush.bf16.msra.mxu0 %v2217
    %2356 = vmatpush.bf16.msra.mxu0 %v2209
    %2357 = vmatpush.bf16.msra.mxu0 %v2201
    %2358 = vmatpush.bf16.msra.mxu0 %v2193
    %2359 = vmatpush.bf16.msra.mxu0 %v2185
    %2360 = vmatmul.bf16.gmra.mxu0 %v1924
    %v2361 = vpop.f32.mrf.mxu0
    %v2362 = vadd.f32 0.0, %v2361
    %v2363 = vpop.f32.mrf.mxu0
    %v2364 = vadd.f32 0.0, %v2363
    %2365 = vdwg.mxu0
    %2366 = vmatpush.bf16.msra.mxu0 %v2242
    %2367 = vmatpush.bf16.msra.mxu0 %v2234
    %2368 = vmatpush.bf16.msra.mxu0 %v2226
    %2369 = vmatpush.bf16.msra.mxu0 %v2218
    %2370 = vmatpush.bf16.msra.mxu0 %v2210
    %2371 = vmatpush.bf16.msra.mxu0 %v2202
    %2372 = vmatpush.bf16.msra.mxu0 %v2194
    %2373 = vmatpush.bf16.msra.mxu0 %v2186
    %2374 = vmatmul.bf16.gmra.mxu0 %v1924
    %v2375 = vpop.f32.mrf.mxu0
    %v2376 = vadd.f32 0.0, %v2375
    %v2377 = vpop.f32.mrf.mxu0
    %v2378 = vadd.f32 0.0, %v2377
    %2379 = vdwg.mxu0
    %2380 = vmatpush.bf16.msra.mxu0 %v2243
    %2381 = vmatpush.bf16.msra.mxu0 %v2235
    %2382 = vmatpush.bf16.msra.mxu0 %v2227
    %2383 = vmatpush.bf16.msra.mxu0 %v2219
    %2384 = vmatpush.bf16.msra.mxu0 %v2211
    %2385 = vmatpush.bf16.msra.mxu0 %v2203
    %2386 = vmatpush.bf16.msra.mxu0 %v2195
    %2387 = vmatpush.bf16.msra.mxu0 %v2187
    %2388 = vmatmul.bf16.gmra.mxu0 %v1924
    %v2389 = vpop.f32.mrf.mxu0
    %v2390 = vadd.f32 0.0, %v2389
    %v2391 = vpop.f32.mrf.mxu0
    %v2392 = vadd.f32 0.0, %v2391
    %2393 = vdwg.mxu0
    %2394 = vmatpush.bf16.msra.mxu0 %v2244
    %2395 = vmatpush.bf16.msra.mxu0 %v2236
    %2396 = vmatpush.bf16.msra.mxu0 %v2228
    %2397 = vmatpush.bf16.msra.mxu0 %v2220
    %2398 = vmatpush.bf16.msra.mxu0 %v2212
    %2399 = vmatpush.bf16.msra.mxu0 %v2204
    %2400 = vmatpush.bf16.msra.mxu0 %v2196
    %2401 = vmatpush.bf16.msra.mxu0 %v2188
    %2402 = vmatmul.bf16.gmra.mxu0 %v1924
    %v2403 = vpop.f32.mrf.mxu0
    %v2404 = vadd.f32 0.0, %v2403
    %v2405 = vpop.f32.mrf.mxu0
    %v2406 = vadd.f32 0.0, %v2405
    %2407 = vdwg.mxu0
    %2408 = vmatpush.bf16.msra.mxu0 %v2245
    %2409 = vmatpush.bf16.msra.mxu0 %v2237
    %2410 = vmatpush.bf16.msra.mxu0 %v2229
    %2411 = vmatpush.bf16.msra.mxu0 %v2221
    %2412 = vmatpush.bf16.msra.mxu0 %v2213
    %2413 = vmatpush.bf16.msra.mxu0 %v2205
    %2414 = vmatpush.bf16.msra.mxu0 %v2197
    %2415 = vmatpush.bf16.msra.mxu0 %v2189
    %2416 = vmatmul.bf16.gmra.mxu0 %v1924
    %v2417 = vpop.f32.mrf.mxu0
    %v2418 = vadd.f32 0.0, %v2417
    %v2419 = vpop.f32.mrf.mxu0
    %v2420 = vadd.f32 0.0, %v2419
    %2421 = vdwg.mxu0
    %v2422 = vpack.c.bf16 %v2320, %v2320
    %v2423 = vpack.c.bf16 %v2322, %v2322
    %2424 = vst [vmem:[#allocation2] sm:$0xf] %v2422
    %2425 = vst [vmem:[#allocation2 + $0x4] sm:$0xf] %v2423
    %v2426 = vpack.c.bf16 %v2334, %v2334
    %v2427 = vpack.c.bf16 %v2336, %v2336
    %2428 = vst [vmem:[#allocation2 + $0x8] sm:$0xf] %v2426
    %2429 = vst [vmem:[#allocation2 + $0xc] sm:$0xf] %v2427
    %v2430 = vpack.c.bf16 %v2348, %v2348
    %v2431 = vpack.c.bf16 %v2350, %v2350
    %2432 = vst [vmem:[#allocation2 + $0x10] sm:$0xf] %v2430
    %2433 = vst [vmem:[#allocation2 + $0x14] sm:$0xf] %v2431
    %v2434 = vpack.c.bf16 %v2362, %v2362
    %v2435 = vpack.c.bf16 %v2364, %v2364
    %2436 = vst [vmem:[#allocation2 + $0x18] sm:$0xf] %v2434
    %2437 = vst [vmem:[#allocation2 + $0x1c] sm:$0xf] %v2435
    %v2438 = vpack.c.bf16 %v2376, %v2376
    %v2439 = vpack.c.bf16 %v2378, %v2378
    %2440 = vst [vmem:[#allocation2 + $0x20] sm:$0xf] %v2438
    %2441 = vst [vmem:[#allocation2 + $0x24] sm:$0xf] %v2439
    %v2442 = vpack.c.bf16 %v2390, %v2390
    %v2443 = vpack.c.bf16 %v2392, %v2392
    %2444 = vst [vmem:[#allocation2 + $0x28] sm:$0xf] %v2442
    %2445 = vst [vmem:[#allocation2 + $0x2c] sm:$0xf] %v2443
    %v2446 = vpack.c.bf16 %v2404, %v2404
    %v2447 = vpack.c.bf16 %v2406, %v2406
    %2448 = vst [vmem:[#allocation2 + $0x30] sm:$0xf] %v2446
    %2449 = vst [vmem:[#allocation2 + $0x34] sm:$0xf] %v2447
    %v2450 = vpack.c.bf16 %v2418, %v2418
    %v2451 = vpack.c.bf16 %v2420, %v2420
    %2452 = vst [vmem:[#allocation2 + $0x38] sm:$0xf] %v2450
    %2453 = vst [vmem:[#allocation2 + $0x3c] sm:$0xf] %v2451
    %v2454 = vld [vmem:[#allocation2] sm:$0xf]
    %v2455 = vld [vmem:[#allocation2 + $0x4] sm:$0xf]
    %v2456 = vld [vmem:[#allocation2 + $0x8] sm:$0xf]
    %v2457 = vld [vmem:[#allocation2 + $0xc] sm:$0xf]
    %v2458 = vld [vmem:[#allocation2 + $0x10] sm:$0xf]
    %v2459 = vld [vmem:[#allocation2 + $0x14] sm:$0xf]
    %v2460 = vld [vmem:[#allocation2 + $0x18] sm:$0xf]
    %v2461 = vld [vmem:[#allocation2 + $0x1c] sm:$0xf]
    %v2462 = vld [vmem:[#allocation2 + $0x20] sm:$0xf]
    %v2463 = vld [vmem:[#allocation2 + $0x24] sm:$0xf]
    %v2464 = vld [vmem:[#allocation2 + $0x28] sm:$0xf]
    %v2465 = vld [vmem:[#allocation2 + $0x2c] sm:$0xf]
    %v2466 = vld [vmem:[#allocation2 + $0x30] sm:$0xf]
    %v2467 = vld [vmem:[#allocation2 + $0x34] sm:$0xf]
    %v2468 = vld [vmem:[#allocation2 + $0x38] sm:$0xf]
    %v2469 = vld [vmem:[#allocation2 + $0x3c] sm:$0xf]
    %v2470 = vld [vmem:[#allocation9 + $0x3] sm:$0x1]
    %v2471 = vperm.slane %v2470, 0
    %v2488 = vunpack.c.l.b16 %v2454
    %v2489 = vunpack.c.l.b16 %v2455
    %v2490 = vunpack.c.l.b16 %v2456
    %v2491 = vunpack.c.l.b16 %v2457
    %v2492 = vunpack.c.l.b16 %v2458
    %v2493 = vunpack.c.l.b16 %v2459
    %v2494 = vunpack.c.l.b16 %v2460
    %v2495 = vunpack.c.l.b16 %v2461
    %v2496 = vunpack.c.l.b16 %v2462
    %v2497 = vunpack.c.l.b16 %v2463
    %v2498 = vunpack.c.l.b16 %v2464
    %v2499 = vunpack.c.l.b16 %v2465
    %v2500 = vunpack.c.l.b16 %v2466
    %v2501 = vunpack.c.l.b16 %v2467
    %v2502 = vunpack.c.l.b16 %v2468
    %v2503 = vunpack.c.l.b16 %v2469
    %v2504 = vpack.c.b16 %v2489, %v2488
    %v2505 = vpack.c.b16 %v2491, %v2490
    %v2506 = vpack.c.b16 %v2493, %v2492
    %v2507 = vpack.c.b16 %v2495, %v2494
    %v2508 = vpack.c.b16 %v2497, %v2496
    %v2509 = vpack.c.b16 %v2499, %v2498
    %v2510 = vpack.c.b16 %v2501, %v2500
    %v2511 = vpack.c.b16 %v2503, %v2502
    %2520 = vmatpush.bf16.msra.mxu0 %v2511
    %2521 = vmatpush.bf16.msra.mxu0 %v2510
    %2522 = vmatpush.bf16.msra.mxu0 %v2509
    %2523 = vmatpush.bf16.msra.mxu0 %v2508
    %2524 = vmatpush.bf16.msra.mxu0 %v2507
    %2525 = vmatpush.bf16.msra.mxu0 %v2506
    %2526 = vmatpush.bf16.msra.mxu0 %v2505
    %2527 = vmatpush.bf16.msra.mxu0 %v2504
    %2528 = vmatmul.bf16.gmra.mxu0 %v634
    %v2529 = vpop.f32.mrf.mxu0
    %v2530 = vadd.f32 %v2471, %v2529
    %v2531 = vpop.f32.mrf.mxu0
    %v2532 = vadd.f32 %v2471, %v2531
    %2533 = vdwg.mxu0
    %2534 = vst [vmem:[#allocation11] sm:$0xff] %v2530
    %2535 = vst [vmem:[#allocation11 + $0x8] sm:$0xff] %v2532
    // Predicated region
    $region34: #{tpu_custom_call.1} parent=1 // pred_check
      _
    $region35: #{tpu_custom_call.1} parent=1 // pred_check_branch
      %2537 = sbr.rel (0) target = $region37
    $region36: #{tpu_custom_call.1} parent=1 // pred_region
      %2539 = vsyncadd [#allocation5], 0
      %s2540 = sshll.u32 [#allocation11], 4
      %s2541 = int_to_ptr.vmem [resolvable:$true] %s2540
      %s2542 = sshll.u32 %s4, 4
      %s2543 = int_to_ptr.hbm [resolvable:$true] %s2542
      %2548 = dma.vmem_to_hbm [thread:$0]  %s2541, 256, %s2543, [#allocation5], 128, 128, 8
    $region37: #{tpu_custom_call.1} parent=1 // pred_fallthru
      _
    // Predicated region
    $region38: #{tpu_custom_call.1} parent=1 // pred_check
      _
    $region39: #{tpu_custom_call.1} parent=1 // pred_check_branch
      %2550 = sbr.rel (0) target = $region41
    $region40: #{tpu_custom_call.1} parent=1 // pred_region
      %2552 = dma.done [#allocation5], 256
    $region41: #{tpu_custom_call.1} parent=1 // pred_fallthru
      _
    %2553 = vsyncpa [#allocation4], 1
    %2554 = vsyncpa [#allocation7], 1
    %2555 = vsyncpa [#allocation10], 1
    %2556 = vsyncpa [#allocation5], 1

</llo_original>
